<compile_context>
chip_gen: v7x
topology: tpu7x:2x2x1
jax: 0.10.0
libtpu: 0.0.40
codegen_flags: <defaults>
</compile_context>

<pallas_src>
import functools

import numpy as np
import jax
import jax.numpy as jnp
from jax import lax
from jax.experimental import pallas as pl
from jax.experimental.pallas import tpu as pltpu

LANE = 128        # lane-dense channel padding for all kernel outputs
SEG_ALIGN = 8     # per-voxel point slots padded to a multiple of this (f32 sublane tile)
TV = 64           # voxels pooled per segmax grid step (one unmasked (TV,128) store)
NEG_BIG = -3.4e38


def _round_up(x, m):
    return (x + m - 1) // m * m


def _pad_cols(a, target):
    pad = target - a.shape[1]
    return jnp.pad(a, ((0, 0), (0, pad))) if pad > 0 else a


def _pad_rows(a, target):
    pad = target - a.shape[0]
    return jnp.pad(a, ((0, pad), (0, 0))) if pad > 0 else a


# -----------------------------------------------------------------------------
# Pallas kernels
# -----------------------------------------------------------------------------

def _mlp2_kernel(x_ref, w1_ref, b1_ref, w2_ref, b2_ref, o_ref):
    """Fused Linear -> ReLU -> Linear on one row tile (bf16 MXU, f32 accum).

    Weights arrive pre-cast to bf16, so there is no per-step VPU cast of a
    block whose contents never change.  Bias add / ReLU stay f32 (v5e's VPU
    has no bf16; this epilogue is not the bottleneck on v6e/v7x either).
    """
    h = jnp.dot(x_ref[...], w1_ref[...], preferred_element_type=jnp.float32)
    h = jnp.maximum(h + b1_ref[...], 0.0)
    o = jnp.dot(h.astype(jnp.bfloat16), w2_ref[...],
                preferred_element_type=jnp.float32)
    o_ref[...] = (o + b2_ref[...]).astype(o_ref.dtype)


def mlp2(x, w1, b1, w2, b2, *, tm=1024, out_dtype=jnp.bfloat16):
    """x: [N, Din] -> [N, Dout_pad] via a row-tiled Pallas pipeline.

    * x is cast to bf16 on the host (halves the streamed input traffic).
    * w1/b1/w2/b2 use constant index maps -> VMEM-resident across grid steps;
      only x / out stream through HBM.
    * Dout_pad is lane-dense (multiple of 128) so stores are unmasked.
    * tm defaults to 1024 rows/step to amortize the ~0.35 us per-step overhead.
    """
    # TODO(synk): mark the constant weight/bias blocks with
    # pipeline_mode=pl.Buffered(1) (single-buffered) once that is reliable in
    # the deployed JAX; it halves their VMEM footprint at production sizes.
    x = x.astype(jnp.bfloat16)
    n, din = x.shape
    hidden = w1.shape[1]
    dout = w2.shape[1]

    tm = max(16, min(tm, _round_up(n, 16)))     # 16-row aligned for packed bf16 tiles
    n_pad = _round_up(n, tm)
    if n_pad != n:
        x = jnp.pad(x, ((0, n_pad - n), (0, 0)))

    out = pl.pallas_call(
        _mlp2_kernel,
        out_shape=jax.ShapeDtypeStruct((n_pad, dout), out_dtype),
        grid=(n_pad // tm,),
        in_specs=[
            pl.BlockSpec((tm, din), lambda i: (i, 0)),       # streamed rows
            pl.BlockSpec((din, hidden), lambda i: (0, 0)),   # resident bf16 weights
            pl.BlockSpec((1, hidden), lambda i: (0, 0)),
            pl.BlockSpec((hidden, dout), lambda i: (0, 0)),
            pl.BlockSpec((1, dout), lambda i: (0, 0)),
        ],
        out_specs=pl.BlockSpec((tm, dout), lambda i: (i, 0)),
        compiler_params=pltpu.CompilerParams(
            dimension_semantics=("parallel",)),
    )(x, w1, b1, w2, b2)
    return out[:n]


def _segmax_kernel(counts_ref, feat_ref, o_ref, *, tv, seg_rows):
    """Vectorized segmented max over a tile of `tv` voxels x `seg_rows` slots.

    counts_ref : VMEM int32 (tv, 1)            true point count per voxel
    feat_ref   : VMEM bf16  (tv*seg_rows, 128) segment-ordered point features
    o_ref      : VMEM bf16  (tv, 128)          pooled voxel features

    Pad slots are masked with an iota-vs-count compare (no sentinel rows).
    No per-voxel scalar loop, no masked per-row stores: the whole tile is
    reduced with vector maxes and written with one unmasked (tv, 128) store.
    """
    h = o_ref.shape[-1]
    cnt = counts_ref[...]                                              # (tv, 1)
    x = feat_ref[...].astype(jnp.float32).reshape(tv, seg_rows, h)
    within = lax.broadcasted_iota(jnp.int32, (1, seg_rows, h), 1)
    valid = within < cnt[:, :, None]                                   # (tv, seg_rows, h)
    x = jnp.where(valid, x, jnp.float32(NEG_BIG))
    pooled = jnp.max(x, axis=1)                                        # (tv, h)
    pooled = jnp.where(cnt > 0, pooled, jnp.float32(0.0))              # padded voxels -> 0
    o_ref[...] = pooled.astype(o_ref.dtype)


def voxel_segmax(feat, counts, m_pad, seg_rows, tv=TV):
    """feat: [m_pad*seg_rows, 128] segment-ordered point features (bf16);
    counts: [m_pad, 1] int32 true per-voxel point counts.

    Returns pooled voxel features [m_pad, 128].  The feature table streams
    through VMEM one (tv*seg_rows, 128) tile per grid step (double-buffered by
    the standard pipeline), so VMEM use is bounded (~hundreds of KB) and
    independent of the total point count.
    """
    t_rows, h = feat.shape
    assert t_rows == m_pad * seg_rows and m_pad % tv == 0
    n_tiles = m_pad // tv
    kernel = functools.partial(_segmax_kernel, tv=tv, seg_rows=seg_rows)
    return pl.pallas_call(
        kernel,
        out_shape=jax.ShapeDtypeStruct((m_pad, h), feat.dtype),
        grid=(n_tiles,),
        in_specs=[
            pl.BlockSpec((tv, 1), lambda t: (t, 0)),                   # per-voxel counts
            pl.BlockSpec((tv * seg_rows, h), lambda t: (t, 0)),        # streamed features
        ],
        out_specs=pl.BlockSpec((tv, h), lambda t: (t, 0)),
        compiler_params=pltpu.CompilerParams(
            dimension_semantics=("parallel",)),
    )(counts, feat)


# -----------------------------------------------------------------------------
# Host-side glue: unique voxels + uniform segment-ordered point layout
# -----------------------------------------------------------------------------

def build_segments(cat_pt_ind, tv=TV, seg_align=SEG_ALIGN):
    """Given int coords [N, 4], build a uniform-stride segment layout.

    Every voxel gets exactly `seg_rows` point slots (max points per voxel,
    rounded up to seg_align); `gather_idx` permutes RAW point rows into that
    layout (pad slots index an all-zero row appended to the point table).
    Returns (unique_coords, gather_idx, counts[m_pad,1], m, m_pad, seg_rows).
    """
    unq, unq_inv, counts = np.unique(
        cat_pt_ind, axis=0, return_inverse=True, return_counts=True)
    unq_inv = np.asarray(unq_inv).reshape(-1).astype(np.int64)
    counts = counts.astype(np.int64)
    n = cat_pt_ind.shape[0]
    m = unq.shape[0]

    m_pad = _round_up(m, tv)
    seg_rows = max(int(_round_up(int(counts.max()), seg_align)), seg_align)
    # TODO(synk): for highly skewed points-per-voxel distributions, cap seg_rows
    # and handle overflow segments in a second pass instead of padding to max.

    order = np.argsort(unq_inv, kind="stable")               # points grouped by voxel
    starts = np.concatenate([[0], np.cumsum(counts)[:-1]])
    vox_of_sorted = unq_inv[order]
    within = np.arange(n) - starts[vox_of_sorted]

    gather_idx = np.full(m_pad * seg_rows, n, dtype=np.int32)  # n -> appended zero row
    gather_idx[vox_of_sorted * seg_rows + within] = order

    counts_col = np.zeros((m_pad, 1), np.int32)
    counts_col[:m, 0] = counts
    return unq.astype(np.int32), gather_idx, counts_col, m, m_pad, seg_rows


# -----------------------------------------------------------------------------
# Synthetic submodules (deterministic weights)
# -----------------------------------------------------------------------------

class CylinderGenerator:
    """cylinder_fea-like: point-wise MLP + scatter-max pooling onto unique voxels."""
    # TODO(synk): BatchNorm layers of the original PPmodel are omitted (no running
    # stats in this synthetic, checkpoint-free setting).
    # NOTE: the MLP runs bf16-in / f32-accum; small deviation from PyTorch's f32
    # Linear layers is expected.

    def __init__(self, key, fea_dim, hidden, out_dim):
        k1, k2 = jax.random.split(key)
        w1 = jax.random.normal(k1, (fea_dim, hidden), jnp.float32) * 0.1
        self.w1 = w1.astype(jnp.bfloat16)                    # pre-cast on host
        self.b1 = jnp.zeros((1, hidden), jnp.float32)
        w2 = jax.random.normal(k2, (hidden, out_dim), jnp.float32) * 0.1
        self.w2 = _pad_cols(w2, LANE).astype(jnp.bfloat16)   # lane-dense output
        self.b2 = jnp.zeros((1, LANE), jnp.float32)
        self.out_dim = out_dim

    def __call__(self, pt_fea_list, vox_list):
        # concat across batch, prepend batch index to the voxel coords
        cat_pt_fea = jnp.concatenate(pt_fea_list, axis=0)            # [N, fea_dim]
        coords_np = []
        for b, vox in enumerate(vox_list):
            vox_np = np.asarray(vox)
            bcol = np.full((vox_np.shape[0], 1), b, dtype=np.int32)
            coords_np.append(np.concatenate([bcol, vox_np.astype(np.int32)], axis=1))
        cat_pt_ind = np.concatenate(coords_np, axis=0)               # [N, 4]

        # unique voxels + uniform segment layout (host side, like torch.unique)
        unq, gather_idx, counts_col, m, m_pad, seg_rows = build_segments(cat_pt_ind)

        # Permute the RAW fea_dim-wide point features into segment order BEFORE
        # the MLP (16x less gather traffic than reordering 128-wide outputs).
        zero_row = jnp.zeros((1, cat_pt_fea.shape[1]), cat_pt_fea.dtype)
        x_sorted = jnp.concatenate([cat_pt_fea, zero_row], axis=0)[
            jnp.asarray(gather_idx)]                                 # [m_pad*seg_rows, fea_dim]

        # point-wise MLP (Pallas, MXU, row-tiled) -> bf16 [m_pad*seg_rows, 128],
        # already in segment order.
        point_feat = mlp2(x_sorted, self.w1, self.b1, self.w2, self.b2,
                          out_dtype=jnp.bfloat16)

        # streamed, fully vectorized segmented scatter-max -> [m_pad, 128] bf16
        pooled = voxel_segmax(point_feat, jnp.asarray(counts_col), m_pad, seg_rows)

        coords = jnp.asarray(unq, dtype=jnp.int32)                   # [M, 4] = (b, x, y, z)
        return coords, pooled                                        # pooled is [m_pad, 128]


class SegmentatorSpconv:
    """Asymm_3d_spconv-like segmentation head.

    TODO(synk): the real module uses submanifold sparse 3D convolutions (spconv);
    here the hot path is a per-voxel (1x1x1) MLP in Pallas followed by a dense
    scatter (`.dense()` equivalent) done in plain JAX.
    """

    def __init__(self, key, in_dim, hidden, num_classes, sparse_shape):
        k1, k2 = jax.random.split(key)
        w1 = jax.random.normal(k1, (in_dim, hidden), jnp.float32) * 0.1
        self.w1 = _pad_rows(w1, LANE).astype(jnp.bfloat16)   # accepts 128-wide padded input
        self.b1 = jnp.zeros((1, hidden), jnp.float32)
        w2 = jax.random.normal(k2, (hidden, num_classes), jnp.float32) * 0.1
        self.w2 = _pad_cols(w2, LANE).astype(jnp.bfloat16)   # lane-dense output
        self.b2 = jnp.zeros((1, LANE), jnp.float32)
        self.num_classes = num_classes
        self.sparse_shape = tuple(int(s) for s in sparse_shape)

    def __call__(self, features_3d, coords, batch_size):
        # per-voxel MLP (Pallas, MXU); runs on [m_pad, 128], only valid rows used
        logits_pad = mlp2(features_3d, self.w1, self.b1, self.w2, self.b2,
                          out_dtype=jnp.float32)
        m = coords.shape[0]
        logits = logits_pad[:m, :self.num_classes]                   # [M, C]

        # scatter straight into channels-first [B, C, X, Y, Z]
        # (avoids materializing + transposing a second dense volume)
        dense = jnp.zeros((batch_size, self.num_classes, *self.sparse_shape),
                          jnp.float32)
        dense = dense.at[coords[:, 0], :, coords[:, 1], coords[:, 2],
                         coords[:, 3]].set(logits)
        return dense


# -----------------------------------------------------------------------------
# Backbone (same composition semantics as the PyTorch module)
# -----------------------------------------------------------------------------

class Backbone:
    def __init__(self, cylin_model, segmentator_spconv, sparse_shape):
        self.name = 'cylinder_asym'
        self.cylinder_3d_generator = cylin_model
        self.cylinder_3d_spconv_seg = segmentator_spconv
        self.sparse_shape = sparse_shape

    def forward(self, train_pt_fea_ten, train_vox_ten, batch_size):
        coords, features_3d = self.cylinder_3d_generator(train_pt_fea_ten, train_vox_ten)
        spatial_features = self.cylinder_3d_spconv_seg(features_3d, coords, batch_size)
        return spatial_features


# -----------------------------------------------------------------------------
# Main
# -----------------------------------------------------------------------------

if __name__ == "__main__":
    key = jax.random.PRNGKey(0)
    k_fea, k_vox, k_gen, k_seg = jax.random.split(key, 4)

    batch_size = 2
    pts_per_batch = 64
    fea_dim = 8
    hidden = 32
    pt_out_dim = 32
    num_classes = 8
    sparse_shape = (8, 8, 4)

    # per-batch point features and integer voxel coordinates (lists, as in PyTorch)
    fea_keys = jax.random.split(k_fea, batch_size)
    vox_keys = jax.random.split(k_vox, batch_size)
    train_pt_fea_ten = [
        jax.random.normal(fea_keys[b], (pts_per_batch, fea_dim), jnp.float32)
        for b in range(batch_size)
    ]
    train_vox_ten = [
        np.asarray(
            jax.random.randint(
                vox_keys[b], (pts_per_batch, 3), 0,
                np.array(sparse_shape, dtype=np.int32), dtype=jnp.int32))
        for b in range(batch_size)
    ]

    generator = CylinderGenerator(k_gen, fea_dim=fea_dim, hidden=hidden, out_dim=pt_out_dim)
    segmentator = SegmentatorSpconv(k_seg, in_dim=pt_out_dim, hidden=hidden,
                                    num_classes=num_classes, sparse_shape=sparse_shape)
    backbone = Backbone(generator, segmentator, sparse_shape)

    spatial_features = backbone.forward(train_pt_fea_ten, train_vox_ten, batch_size)
    spatial_features = jax.block_until_ready(spatial_features)

    assert spatial_features.shape == (batch_size, num_classes, *sparse_shape)
    assert bool(jnp.all(jnp.isfinite(spatial_features)))
    print("KERNEL_OK")
</pallas_src>

<mosaic_0001>
module attributes {stable_mosaic.version = 11 : i64} {
  func.func @_mlp2_kernel(%arg0: i32, %arg1: memref<1024x8xbf16, #tpu.memory_space<vmem>>, %arg2: memref<8x32xbf16, #tpu.memory_space<vmem>>, %arg3: memref<1x32xf32, #tpu.memory_space<vmem>>, %arg4: memref<32x128xbf16, #tpu.memory_space<vmem>>, %arg5: memref<1x128xf32, #tpu.memory_space<vmem>>, %arg6: memref<1024x128xbf16, #tpu.memory_space<vmem>>) attributes {dimension_semantics = [#tpu.dimension_semantics<parallel>], iteration_bounds = array<i64: 1>, scalar_prefetch = 0 : i64, scratch_operands = 0 : i64, tpu.core_type = #tpu.core_type<tc>, window_params = [{transform_indices = @transform_0, window_bounds = array<i64: 1024, 8>}, {pipeline_mode = #tpu.pipeline_mode<synchronous>, transform_indices = @transform_1, window_bounds = array<i64: 8, 32>}, {pipeline_mode = #tpu.pipeline_mode<synchronous>, transform_indices = @transform_2, window_bounds = array<i64: 1, 32>}, {pipeline_mode = #tpu.pipeline_mode<synchronous>, transform_indices = @transform_3, window_bounds = array<i64: 32, 128>}, {pipeline_mode = #tpu.pipeline_mode<synchronous>, transform_indices = @transform_4, window_bounds = array<i64: 1, 128>}, {transform_indices = @transform_5, window_bounds = array<i64: 1024, 128>}]} {
    %c0 = arith.constant 0 : index
    %c0_0 = arith.constant 0 : index
    %0 = vector.load %arg1[%c0, %c0_0] : memref<1024x8xbf16, #tpu.memory_space<vmem>>, vector<1024x8xbf16>
    %c0_1 = arith.constant 0 : index
    %c0_2 = arith.constant 0 : index
    %1 = vector.load %arg2[%c0_1, %c0_2] : memref<8x32xbf16, #tpu.memory_space<vmem>>, vector<8x32xbf16>
    %cst = arith.constant dense<0.000000e+00> : vector<1024x32xf32>
    %2 = tpu.matmul %0, %1, %cst {dimension_numbers = #tpu.dot_dimension_numbers<[1], [0], [0], [1], [0, 0, 1, 1], [], []>} : vector<1024x8xbf16>, vector<8x32xbf16>, vector<1024x32xf32> -> vector<1024x32xf32>
    %c0_3 = arith.constant 0 : index
    %c0_4 = arith.constant 0 : index
    %3 = vector.load %arg3[%c0_3, %c0_4] : memref<1x32xf32, #tpu.memory_space<vmem>>, vector<1x32xf32>
    %4 = vector.broadcast %3 : vector<1x32xf32> to vector<1024x32xf32>
    %5 = arith.addf %2, %4 : vector<1024x32xf32>
    %cst_5 = arith.constant 0.000000e+00 : f32
    %6 = vector.broadcast %cst_5 : f32 to vector<1024x32xf32>
    %7 = arith.maximumf %5, %6 : vector<1024x32xf32>
    %8 = arith.truncf %7 : vector<1024x32xf32> to vector<1024x32xbf16>
    %c0_6 = arith.constant 0 : index
    %c0_7 = arith.constant 0 : index
    %9 = vector.load %arg4[%c0_6, %c0_7] : memref<32x128xbf16, #tpu.memory_space<vmem>>, vector<32x128xbf16>
    %cst_8 = arith.constant dense<0.000000e+00> : vector<1024x128xf32>
    %10 = tpu.matmul %8, %9, %cst_8 {dimension_numbers = #tpu.dot_dimension_numbers<[1], [0], [0], [1], [0, 0, 1, 1], [], []>} : vector<1024x32xbf16>, vector<32x128xbf16>, vector<1024x128xf32> -> vector<1024x128xf32>
    %c0_9 = arith.constant 0 : index
    %c0_10 = arith.constant 0 : index
    %11 = vector.load %arg5[%c0_9, %c0_10] : memref<1x128xf32, #tpu.memory_space<vmem>>, vector<1x128xf32>
    %12 = vector.broadcast %11 : vector<1x128xf32> to vector<1024x128xf32>
    %13 = arith.addf %10, %12 : vector<1024x128xf32>
    %14 = arith.truncf %13 : vector<1024x128xf32> to vector<1024x128xbf16>
    %c0_11 = arith.constant 0 : index
    %c0_12 = arith.constant 0 : index
    %15 = vector.load %arg6[%c0_11, %c0_12] : memref<1024x128xbf16, #tpu.memory_space<vmem>>, vector<1024x128xbf16>
    tpu.vector_store %arg6[%c0_11, %c0_12], %14 {strides = array<i32>} : memref<1024x128xbf16, #tpu.memory_space<vmem>>, vector<1024x128xbf16>,
    return
  }
  func.func @transform_0(%arg0: i32) -> (i32, i32) {
    %c0_i32 = arith.constant 0 : i32
    %c0_i32_0 = arith.constant 0 : i32
    return %arg0, %c0_i32 : i32, i32
  }
  func.func @transform_1(%arg0: i32) -> (i32, i32) {
    %c0_i32 = arith.constant 0 : i32
    %c0_i32_0 = arith.constant 0 : i32
    %c0_i32_1 = arith.constant 0 : i32
    return %c0_i32, %c0_i32_0 : i32, i32
  }
  func.func @transform_2(%arg0: i32) -> (i32, i32) {
    %c0_i32 = arith.constant 0 : i32
    %c0_i32_0 = arith.constant 0 : i32
    %c0_i32_1 = arith.constant 0 : i32
    return %c0_i32, %c0_i32_0 : i32, i32
  }
  func.func @transform_3(%arg0: i32) -> (i32, i32) {
    %c0_i32 = arith.constant 0 : i32
    %c0_i32_0 = arith.constant 0 : i32
    %c0_i32_1 = arith.constant 0 : i32
    return %c0_i32, %c0_i32_0 : i32, i32
  }
  func.func @transform_4(%arg0: i32) -> (i32, i32) {
    %c0_i32 = arith.constant 0 : i32
    %c0_i32_0 = arith.constant 0 : i32
    %c0_i32_1 = arith.constant 0 : i32
    return %c0_i32, %c0_i32_0 : i32, i32
  }
  func.func @transform_5(%arg0: i32) -> (i32, i32) {
    %c0_i32 = arith.constant 0 : i32
    %c0_i32_0 = arith.constant 0 : i32
    return %arg0, %c0_i32 : i32, i32
  }
}

</mosaic_0001>

<llo_original>
// kernel: tpu_custom_call.1
$region0: #{tpu_custom_call.1}
  #allocation0 [shape = 'u32[]', space=smem, size = 0x4, offset = 0x4, fixed_abs, tag = 'smem constant byte address 0x4 - core index']
  #allocation1 [shape = 'u32[144,128]{1,0:T(1,128)}', space=vmem, size = 0x12000, scoped, tag = 'internal scratch']
  %s0 = inlined_call_operand.vmem [shape: bf16[1024,8], index: 0, kind: input, shape index: {}]
  %s1 = inlined_call_operand.vmem [shape: bf16[8,32], index: 1, kind: input, shape index: {}]
  %s2 = inlined_call_operand.vmem [shape: f32[1,32], index: 2, kind: input, shape index: {}]
  %s3 = inlined_call_operand.vmem [shape: bf16[32,128], index: 3, kind: input, shape index: {}]
  %s4 = inlined_call_operand.vmem [shape: f32[1,128], index: 4, kind: input, shape index: {}]
  %s5 = inlined_call_operand.hbm [shape: bf16[1024,128], index: 5, kind: output, shape index: {}]
  %s6 = sld [smem:[#allocation0]]
  $region30: #{tpu_custom_call.1} parent=0
    _
  %s8 = ssub.s32 1, %s6
  %s9 = scalar_select 0, %s8, %s6
  $region1: #{tpu_custom_call.1} parent=0
    #allocation2 [shape = 'u8[262144]{0}', space=vmem, size = 0x40000, scoped, tag = 'output window, operand 0, single buffered']
    #allocation3 [shape = 's32[1]{0}', space=sflag, size = 0x4, scoped, tag = 'scoped memory for tpu_custom_call.1']
    %10 = vsyncpa [#allocation3], 0
    // Predicated region
    $region2: #{tpu_custom_call.1} parent=1 // pred_check
      _
    $region3: #{tpu_custom_call.1} parent=1 // pred_check_branch
      %12 = sbr.rel (0) target = $region5
    $region4: #{tpu_custom_call.1} parent=1 // pred_region
      _
    $region5: #{tpu_custom_call.1} parent=1 // pred_fallthru
      _
    // Predicated region
    $region6: #{tpu_custom_call.1} parent=1 // pred_check
      _
    $region7: #{tpu_custom_call.1} parent=1 // pred_check_branch
      %14 = sbr.rel (0) target = $region9
    $region8: #{tpu_custom_call.1} parent=1 // pred_region
      _
    $region9: #{tpu_custom_call.1} parent=1 // pred_fallthru
      _
    // Predicated region
    $region10: #{tpu_custom_call.1} parent=1 // pred_check
      _
    $region11: #{tpu_custom_call.1} parent=1 // pred_check_branch
      %16 = sbr.rel (0) target = $region13
    $region12: #{tpu_custom_call.1} parent=1 // pred_region
      _
    $region13: #{tpu_custom_call.1} parent=1 // pred_fallthru
      _
    // Predicated region
    $region14: #{tpu_custom_call.1} parent=1 // pred_check
      _
    $region15: #{tpu_custom_call.1} parent=1 // pred_check_branch
      %18 = sbr.rel (0) target = $region17
    $region16: #{tpu_custom_call.1} parent=1 // pred_region
      _
    $region17: #{tpu_custom_call.1} parent=1 // pred_fallthru
      _
    // Predicated region
    $region18: #{tpu_custom_call.1} parent=1 // pred_check
      _
    $region19: #{tpu_custom_call.1} parent=1 // pred_check_branch
      %20 = sbr.rel (0) target = $region21
    $region20: #{tpu_custom_call.1} parent=1 // pred_region
      _
    $region21: #{tpu_custom_call.1} parent=1 // pred_fallthru
      _
    %v22 = vld [vmem:[%s0] sm:$0xf]
    %v23 = vld [vmem:[%s0 + $0x4] sm:$0xf]
    %v24 = vld [vmem:[%s0 + $0x8] sm:$0xf]
    %v25 = vld [vmem:[%s0 + $0xc] sm:$0xf]
    %v26 = vld [vmem:[%s0 + $0x10] sm:$0xf]
    %v27 = vld [vmem:[%s0 + $0x14] sm:$0xf]
    %v28 = vld [vmem:[%s0 + $0x18] sm:$0xf]
    %v29 = vld [vmem:[%s0 + $0x1c] sm:$0xf]
    %v30 = vld [vmem:[%s0 + $0x20] sm:$0xf]
    %v31 = vld [vmem:[%s0 + $0x24] sm:$0xf]
    %v32 = vld [vmem:[%s0 + $0x28] sm:$0xf]
    %v33 = vld [vmem:[%s0 + $0x2c] sm:$0xf]
    %v34 = vld [vmem:[%s0 + $0x30] sm:$0xf]
    %v35 = vld [vmem:[%s0 + $0x34] sm:$0xf]
    %v36 = vld [vmem:[%s0 + $0x38] sm:$0xf]
    %v37 = vld [vmem:[%s0 + $0x3c] sm:$0xf]
    %v38 = vld [vmem:[%s0 + $0x40] sm:$0xf]
    %v39 = vld [vmem:[%s0 + $0x44] sm:$0xf]
    %v40 = vld [vmem:[%s0 + $0x48] sm:$0xf]
    %v41 = vld [vmem:[%s0 + $0x4c] sm:$0xf]
    %v42 = vld [vmem:[%s0 + $0x50] sm:$0xf]
    %v43 = vld [vmem:[%s0 + $0x54] sm:$0xf]
    %v44 = vld [vmem:[%s0 + $0x58] sm:$0xf]
    %v45 = vld [vmem:[%s0 + $0x5c] sm:$0xf]
    %v46 = vld [vmem:[%s0 + $0x60] sm:$0xf]
    %v47 = vld [vmem:[%s0 + $0x64] sm:$0xf]
    %v48 = vld [vmem:[%s0 + $0x68] sm:$0xf]
    %v49 = vld [vmem:[%s0 + $0x6c] sm:$0xf]
    %v50 = vld [vmem:[%s0 + $0x70] sm:$0xf]
    %v51 = vld [vmem:[%s0 + $0x74] sm:$0xf]
    %v52 = vld [vmem:[%s0 + $0x78] sm:$0xf]
    %v53 = vld [vmem:[%s0 + $0x7c] sm:$0xf]
    %v54 = vld [vmem:[%s0 + $0x80] sm:$0xf]
    %v55 = vld [vmem:[%s0 + $0x84] sm:$0xf]
    %v56 = vld [vmem:[%s0 + $0x88] sm:$0xf]
    %v57 = vld [vmem:[%s0 + $0x8c] sm:$0xf]
    %v58 = vld [vmem:[%s0 + $0x90] sm:$0xf]
    %v59 = vld [vmem:[%s0 + $0x94] sm:$0xf]
    %v60 = vld [vmem:[%s0 + $0x98] sm:$0xf]
    %v61 = vld [vmem:[%s0 + $0x9c] sm:$0xf]
    %v62 = vld [vmem:[%s0 + $0xa0] sm:$0xf]
    %v63 = vld [vmem:[%s0 + $0xa4] sm:$0xf]
    %v64 = vld [vmem:[%s0 + $0xa8] sm:$0xf]
    %v65 = vld [vmem:[%s0 + $0xac] sm:$0xf]
    %v66 = vld [vmem:[%s0 + $0xb0] sm:$0xf]
    %v67 = vld [vmem:[%s0 + $0xb4] sm:$0xf]
    %v68 = vld [vmem:[%s0 + $0xb8] sm:$0xf]
    %v69 = vld [vmem:[%s0 + $0xbc] sm:$0xf]
    %v70 = vld [vmem:[%s0 + $0xc0] sm:$0xf]
    %v71 = vld [vmem:[%s0 + $0xc4] sm:$0xf]
    %v72 = vld [vmem:[%s0 + $0xc8] sm:$0xf]
    %v73 = vld [vmem:[%s0 + $0xcc] sm:$0xf]
    %v74 = vld [vmem:[%s0 + $0xd0] sm:$0xf]
    %v75 = vld [vmem:[%s0 + $0xd4] sm:$0xf]
    %v76 = vld [vmem:[%s0 + $0xd8] sm:$0xf]
    %v77 = vld [vmem:[%s0 + $0xdc] sm:$0xf]
    %v78 = vld [vmem:[%s0 + $0xe0] sm:$0xf]
    %v79 = vld [vmem:[%s0 + $0xe4] sm:$0xf]
    %v80 = vld [vmem:[%s0 + $0xe8] sm:$0xf]
    %v81 = vld [vmem:[%s0 + $0xec] sm:$0xf]
    %v82 = vld [vmem:[%s0 + $0xf0] sm:$0xf]
    %v83 = vld [vmem:[%s0 + $0xf4] sm:$0xf]
    %v84 = vld [vmem:[%s0 + $0xf8] sm:$0xf]
    %v85 = vld [vmem:[%s0 + $0xfc] sm:$0xf]
    %v86 = vld [vmem:[%s0 + $0x100] sm:$0xf]
    %v87 = vld [vmem:[%s0 + $0x104] sm:$0xf]
    %v88 = vld [vmem:[%s0 + $0x108] sm:$0xf]
    %v89 = vld [vmem:[%s0 + $0x10c] sm:$0xf]
    %v90 = vld [vmem:[%s0 + $0x110] sm:$0xf]
    %v91 = vld [vmem:[%s0 + $0x114] sm:$0xf]
    %v92 = vld [vmem:[%s0 + $0x118] sm:$0xf]
    %v93 = vld [vmem:[%s0 + $0x11c] sm:$0xf]
    %v94 = vld [vmem:[%s0 + $0x120] sm:$0xf]
    %v95 = vld [vmem:[%s0 + $0x124] sm:$0xf]
    %v96 = vld [vmem:[%s0 + $0x128] sm:$0xf]
    %v97 = vld [vmem:[%s0 + $0x12c] sm:$0xf]
    %v98 = vld [vmem:[%s0 + $0x130] sm:$0xf]
    %v99 = vld [vmem:[%s0 + $0x134] sm:$0xf]
    %v100 = vld [vmem:[%s0 + $0x138] sm:$0xf]
    %v101 = vld [vmem:[%s0 + $0x13c] sm:$0xf]
    %v102 = vld [vmem:[%s0 + $0x140] sm:$0xf]
    %v103 = vld [vmem:[%s0 + $0x144] sm:$0xf]
    %v104 = vld [vmem:[%s0 + $0x148] sm:$0xf]
    %v105 = vld [vmem:[%s0 + $0x14c] sm:$0xf]
    %v106 = vld [vmem:[%s0 + $0x150] sm:$0xf]
    %v107 = vld [vmem:[%s0 + $0x154] sm:$0xf]
    %v108 = vld [vmem:[%s0 + $0x158] sm:$0xf]
    %v109 = vld [vmem:[%s0 + $0x15c] sm:$0xf]
    %v110 = vld [vmem:[%s0 + $0x160] sm:$0xf]
    %v111 = vld [vmem:[%s0 + $0x164] sm:$0xf]
    %v112 = vld [vmem:[%s0 + $0x168] sm:$0xf]
    %v113 = vld [vmem:[%s0 + $0x16c] sm:$0xf]
    %v114 = vld [vmem:[%s0 + $0x170] sm:$0xf]
    %v115 = vld [vmem:[%s0 + $0x174] sm:$0xf]
    %v116 = vld [vmem:[%s0 + $0x178] sm:$0xf]
    %v117 = vld [vmem:[%s0 + $0x17c] sm:$0xf]
    %v118 = vld [vmem:[%s0 + $0x180] sm:$0xf]
    %v119 = vld [vmem:[%s0 + $0x184] sm:$0xf]
    %v120 = vld [vmem:[%s0 + $0x188] sm:$0xf]
    %v121 = vld [vmem:[%s0 + $0x18c] sm:$0xf]
    %v122 = vld [vmem:[%s0 + $0x190] sm:$0xf]
    %v123 = vld [vmem:[%s0 + $0x194] sm:$0xf]
    %v124 = vld [vmem:[%s0 + $0x198] sm:$0xf]
    %v125 = vld [vmem:[%s0 + $0x19c] sm:$0xf]
    %v126 = vld [vmem:[%s0 + $0x1a0] sm:$0xf]
    %v127 = vld [vmem:[%s0 + $0x1a4] sm:$0xf]
    %v128 = vld [vmem:[%s0 + $0x1a8] sm:$0xf]
    %v129 = vld [vmem:[%s0 + $0x1ac] sm:$0xf]
    %v130 = vld [vmem:[%s0 + $0x1b0] sm:$0xf]
    %v131 = vld [vmem:[%s0 + $0x1b4] sm:$0xf]
    %v132 = vld [vmem:[%s0 + $0x1b8] sm:$0xf]
    %v133 = vld [vmem:[%s0 + $0x1bc] sm:$0xf]
    %v134 = vld [vmem:[%s0 + $0x1c0] sm:$0xf]
    %v135 = vld [vmem:[%s0 + $0x1c4] sm:$0xf]
    %v136 = vld [vmem:[%s0 + $0x1c8] sm:$0xf]
    %v137 = vld [vmem:[%s0 + $0x1cc] sm:$0xf]
    %v138 = vld [vmem:[%s0 + $0x1d0] sm:$0xf]
    %v139 = vld [vmem:[%s0 + $0x1d4] sm:$0xf]
    %v140 = vld [vmem:[%s0 + $0x1d8] sm:$0xf]
    %v141 = vld [vmem:[%s0 + $0x1dc] sm:$0xf]
    %v142 = vld [vmem:[%s0 + $0x1e0] sm:$0xf]
    %v143 = vld [vmem:[%s0 + $0x1e4] sm:$0xf]
    %v144 = vld [vmem:[%s0 + $0x1e8] sm:$0xf]
    %v145 = vld [vmem:[%s0 + $0x1ec] sm:$0xf]
    %v146 = vld [vmem:[%s0 + $0x1f0] sm:$0xf]
    %v147 = vld [vmem:[%s0 + $0x1f4] sm:$0xf]
    %v148 = vld [vmem:[%s0 + $0x1f8] sm:$0xf]
    %v149 = vld [vmem:[%s0 + $0x1fc] sm:$0xf]
    %v150 = vld [vmem:[%s1] sm:$0xf]
    %v151 = vld [vmem:[%s2] sm:$0x1]
    %v153 = vlaneseq
    %v154 = vshrl.u32 %v153, 7
    %v155 = vsub.s32 0, %v154
    %v156 = vrot.slane %v151, %v155
    %v286 = vunpack.c.l.b16 %v22
    %v287 = vunpack.c.l.b16 %v23
    %v288 = vunpack.c.l.b16 %v24
    %v289 = vunpack.c.l.b16 %v25
    %v290 = vunpack.c.l.b16 %v26
    %v291 = vunpack.c.l.b16 %v27
    %v292 = vunpack.c.l.b16 %v28
    %v293 = vunpack.c.l.b16 %v29
    %v294 = vunpack.c.l.b16 %v30
    %v295 = vunpack.c.l.b16 %v31
    %v296 = vunpack.c.l.b16 %v32
    %v297 = vunpack.c.l.b16 %v33
    %v298 = vunpack.c.l.b16 %v34
    %v299 = vunpack.c.l.b16 %v35
    %v300 = vunpack.c.l.b16 %v36
    %v301 = vunpack.c.l.b16 %v37
    %v302 = vunpack.c.l.b16 %v38
    %v303 = vunpack.c.l.b16 %v39
    %v304 = vunpack.c.l.b16 %v40
    %v305 = vunpack.c.l.b16 %v41
    %v306 = vunpack.c.l.b16 %v42
    %v307 = vunpack.c.l.b16 %v43
    %v308 = vunpack.c.l.b16 %v44
    %v309 = vunpack.c.l.b16 %v45
    %v310 = vunpack.c.l.b16 %v46
    %v311 = vunpack.c.l.b16 %v47
    %v312 = vunpack.c.l.b16 %v48
    %v313 = vunpack.c.l.b16 %v49
    %v314 = vunpack.c.l.b16 %v50
    %v315 = vunpack.c.l.b16 %v51
    %v316 = vunpack.c.l.b16 %v52
    %v317 = vunpack.c.l.b16 %v53
    %v318 = vunpack.c.l.b16 %v54
    %v319 = vunpack.c.l.b16 %v55
    %v320 = vunpack.c.l.b16 %v56
    %v321 = vunpack.c.l.b16 %v57
    %v322 = vunpack.c.l.b16 %v58
    %v323 = vunpack.c.l.b16 %v59
    %v324 = vunpack.c.l.b16 %v60
    %v325 = vunpack.c.l.b16 %v61
    %v326 = vunpack.c.l.b16 %v62
    %v327 = vunpack.c.l.b16 %v63
    %v328 = vunpack.c.l.b16 %v64
    %v329 = vunpack.c.l.b16 %v65
    %v330 = vunpack.c.l.b16 %v66
    %v331 = vunpack.c.l.b16 %v67
    %v332 = vunpack.c.l.b16 %v68
    %v333 = vunpack.c.l.b16 %v69
    %v334 = vunpack.c.l.b16 %v70
    %v335 = vunpack.c.l.b16 %v71
    %v336 = vunpack.c.l.b16 %v72
    %v337 = vunpack.c.l.b16 %v73
    %v338 = vunpack.c.l.b16 %v74
    %v339 = vunpack.c.l.b16 %v75
    %v340 = vunpack.c.l.b16 %v76
    %v341 = vunpack.c.l.b16 %v77
    %v342 = vunpack.c.l.b16 %v78
    %v343 = vunpack.c.l.b16 %v79
    %v344 = vunpack.c.l.b16 %v80
    %v345 = vunpack.c.l.b16 %v81
    %v346 = vunpack.c.l.b16 %v82
    %v347 = vunpack.c.l.b16 %v83
    %v348 = vunpack.c.l.b16 %v84
    %v349 = vunpack.c.l.b16 %v85
    %v350 = vunpack.c.l.b16 %v86
    %v351 = vunpack.c.l.b16 %v87
    %v352 = vunpack.c.l.b16 %v88
    %v353 = vunpack.c.l.b16 %v89
    %v354 = vunpack.c.l.b16 %v90
    %v355 = vunpack.c.l.b16 %v91
    %v356 = vunpack.c.l.b16 %v92
    %v357 = vunpack.c.l.b16 %v93
    %v358 = vunpack.c.l.b16 %v94
    %v359 = vunpack.c.l.b16 %v95
    %v360 = vunpack.c.l.b16 %v96
    %v361 = vunpack.c.l.b16 %v97
    %v362 = vunpack.c.l.b16 %v98
    %v363 = vunpack.c.l.b16 %v99
    %v364 = vunpack.c.l.b16 %v100
    %v365 = vunpack.c.l.b16 %v101
    %v366 = vunpack.c.l.b16 %v102
    %v367 = vunpack.c.l.b16 %v103
    %v368 = vunpack.c.l.b16 %v104
    %v369 = vunpack.c.l.b16 %v105
    %v370 = vunpack.c.l.b16 %v106
    %v371 = vunpack.c.l.b16 %v107
    %v372 = vunpack.c.l.b16 %v108
    %v373 = vunpack.c.l.b16 %v109
    %v374 = vunpack.c.l.b16 %v110
    %v375 = vunpack.c.l.b16 %v111
    %v376 = vunpack.c.l.b16 %v112
    %v377 = vunpack.c.l.b16 %v113
    %v378 = vunpack.c.l.b16 %v114
    %v379 = vunpack.c.l.b16 %v115
    %v380 = vunpack.c.l.b16 %v116
    %v381 = vunpack.c.l.b16 %v117
    %v382 = vunpack.c.l.b16 %v118
    %v383 = vunpack.c.l.b16 %v119
    %v384 = vunpack.c.l.b16 %v120
    %v385 = vunpack.c.l.b16 %v121
    %v386 = vunpack.c.l.b16 %v122
    %v387 = vunpack.c.l.b16 %v123
    %v388 = vunpack.c.l.b16 %v124
    %v389 = vunpack.c.l.b16 %v125
    %v390 = vunpack.c.l.b16 %v126
    %v391 = vunpack.c.l.b16 %v127
    %v392 = vunpack.c.l.b16 %v128
    %v393 = vunpack.c.l.b16 %v129
    %v394 = vunpack.c.l.b16 %v130
    %v395 = vunpack.c.l.b16 %v131
    %v396 = vunpack.c.l.b16 %v132
    %v397 = vunpack.c.l.b16 %v133
    %v398 = vunpack.c.l.b16 %v134
    %v399 = vunpack.c.l.b16 %v135
    %v400 = vunpack.c.l.b16 %v136
    %v401 = vunpack.c.l.b16 %v137
    %v402 = vunpack.c.l.b16 %v138
    %v403 = vunpack.c.l.b16 %v139
    %v404 = vunpack.c.l.b16 %v140
    %v405 = vunpack.c.l.b16 %v141
    %v406 = vunpack.c.l.b16 %v142
    %v407 = vunpack.c.l.b16 %v143
    %v408 = vunpack.c.l.b16 %v144
    %v409 = vunpack.c.l.b16 %v145
    %v410 = vunpack.c.l.b16 %v146
    %v411 = vunpack.c.l.b16 %v147
    %v412 = vunpack.c.l.b16 %v148
    %v413 = vunpack.c.l.b16 %v149
    %v414 = vpack.c.b16 %v287, %v286
    %v415 = vpack.c.b16 %v289, %v288
    %v416 = vpack.c.b16 %v291, %v290
    %v417 = vpack.c.b16 %v293, %v292
    %v418 = vpack.c.b16 %v295, %v294
    %v419 = vpack.c.b16 %v297, %v296
    %v420 = vpack.c.b16 %v299, %v298
    %v421 = vpack.c.b16 %v301, %v300
    %v422 = vpack.c.b16 %v303, %v302
    %v423 = vpack.c.b16 %v305, %v304
    %v424 = vpack.c.b16 %v307, %v306
    %v425 = vpack.c.b16 %v309, %v308
    %v426 = vpack.c.b16 %v311, %v310
    %v427 = vpack.c.b16 %v313, %v312
    %v428 = vpack.c.b16 %v315, %v314
    %v429 = vpack.c.b16 %v317, %v316
    %v430 = vpack.c.b16 %v319, %v318
    %v431 = vpack.c.b16 %v321, %v320
    %v432 = vpack.c.b16 %v323, %v322
    %v433 = vpack.c.b16 %v325, %v324
    %v434 = vpack.c.b16 %v327, %v326
    %v435 = vpack.c.b16 %v329, %v328
    %v436 = vpack.c.b16 %v331, %v330
    %v437 = vpack.c.b16 %v333, %v332
    %v438 = vpack.c.b16 %v335, %v334
    %v439 = vpack.c.b16 %v337, %v336
    %v440 = vpack.c.b16 %v339, %v338
    %v441 = vpack.c.b16 %v341, %v340
    %v442 = vpack.c.b16 %v343, %v342
    %v443 = vpack.c.b16 %v345, %v344
    %v444 = vpack.c.b16 %v347, %v346
    %v445 = vpack.c.b16 %v349, %v348
    %v446 = vpack.c.b16 %v351, %v350
    %v447 = vpack.c.b16 %v353, %v352
    %v448 = vpack.c.b16 %v355, %v354
    %v449 = vpack.c.b16 %v357, %v356
    %v450 = vpack.c.b16 %v359, %v358
    %v451 = vpack.c.b16 %v361, %v360
    %v452 = vpack.c.b16 %v363, %v362
    %v453 = vpack.c.b16 %v365, %v364
    %v454 = vpack.c.b16 %v367, %v366
    %v455 = vpack.c.b16 %v369, %v368
    %v456 = vpack.c.b16 %v371, %v370
    %v457 = vpack.c.b16 %v373, %v372
    %v458 = vpack.c.b16 %v375, %v374
    %v459 = vpack.c.b16 %v377, %v376
    %v460 = vpack.c.b16 %v379, %v378
    %v461 = vpack.c.b16 %v381, %v380
    %v462 = vpack.c.b16 %v383, %v382
    %v463 = vpack.c.b16 %v385, %v384
    %v464 = vpack.c.b16 %v387, %v386
    %v465 = vpack.c.b16 %v389, %v388
    %v466 = vpack.c.b16 %v391, %v390
    %v467 = vpack.c.b16 %v393, %v392
    %v468 = vpack.c.b16 %v395, %v394
    %v469 = vpack.c.b16 %v397, %v396
    %v470 = vpack.c.b16 %v399, %v398
    %v471 = vpack.c.b16 %v401, %v400
    %v472 = vpack.c.b16 %v403, %v402
    %v473 = vpack.c.b16 %v405, %v404
    %v474 = vpack.c.b16 %v407, %v406
    %v475 = vpack.c.b16 %v409, %v408
    %v476 = vpack.c.b16 %v411, %v410
    %v477 = vpack.c.b16 %v413, %v412
    %vm478 = vcmask 64512
    %v480 = vsel %vm478, %v414, 0
    %v483 = vsel %vm478, %v415, 0
    %v486 = vsel %vm478, %v416, 0
    %v489 = vsel %vm478, %v417, 0
    %v492 = vsel %vm478, %v418, 0
    %v495 = vsel %vm478, %v419, 0
    %v498 = vsel %vm478, %v420, 0
    %v501 = vsel %vm478, %v421, 0
    %v504 = vsel %vm478, %v422, 0
    %v507 = vsel %vm478, %v423, 0
    %v510 = vsel %vm478, %v424, 0
    %v513 = vsel %vm478, %v425, 0
    %v516 = vsel %vm478, %v426, 0
    %v519 = vsel %vm478, %v427, 0
    %v522 = vsel %vm478, %v428, 0
    %v525 = vsel %vm478, %v429, 0
    %v528 = vsel %vm478, %v430, 0
    %v531 = vsel %vm478, %v431, 0
    %v534 = vsel %vm478, %v432, 0
    %v537 = vsel %vm478, %v433, 0
    %v540 = vsel %vm478, %v434, 0
    %v543 = vsel %vm478, %v435, 0
    %v546 = vsel %vm478, %v436, 0
    %v549 = vsel %vm478, %v437, 0
    %v552 = vsel %vm478, %v438, 0
    %v555 = vsel %vm478, %v439, 0
    %v558 = vsel %vm478, %v440, 0
    %v561 = vsel %vm478, %v441, 0
    %v564 = vsel %vm478, %v442, 0
    %v567 = vsel %vm478, %v443, 0
    %v570 = vsel %vm478, %v444, 0
    %v573 = vsel %vm478, %v445, 0
    %v576 = vsel %vm478, %v446, 0
    %v579 = vsel %vm478, %v447, 0
    %v582 = vsel %vm478, %v448, 0
    %v585 = vsel %vm478, %v449, 0
    %v588 = vsel %vm478, %v450, 0
    %v591 = vsel %vm478, %v451, 0
    %v594 = vsel %vm478, %v452, 0
    %v597 = vsel %vm478, %v453, 0
    %v600 = vsel %vm478, %v454, 0
    %v603 = vsel %vm478, %v455, 0
    %v606 = vsel %vm478, %v456, 0
    %v609 = vsel %vm478, %v457, 0
    %v612 = vsel %vm478, %v458, 0
    %v615 = vsel %vm478, %v459, 0
    %v618 = vsel %vm478, %v460, 0
    %v621 = vsel %vm478, %v461, 0
    %v624 = vsel %vm478, %v462, 0
    %v627 = vsel %vm478, %v463, 0
    %v630 = vsel %vm478, %v464, 0
    %v633 = vsel %vm478, %v465, 0
    %v636 = vsel %vm478, %v466, 0
    %v639 = vsel %vm478, %v467, 0
    %v642 = vsel %vm478, %v468, 0
    %v645 = vsel %vm478, %v469, 0
    %v648 = vsel %vm478, %v470, 0
    %v651 = vsel %vm478, %v471, 0
    %v654 = vsel %vm478, %v472, 0
    %v657 = vsel %vm478, %v473, 0
    %v660 = vsel %vm478, %v474, 0
    %v663 = vsel %vm478, %v475, 0
    %v666 = vsel %vm478, %v476, 0
    %v669 = vsel %vm478, %v477, 0
    %vm671 = vcmask 1043456
    %v673 = vsel %vm671, %v150, 0
    %675 = vmatprep.subr.bf16.mxu0 0
    %676 = vmatpush1.bf16.msra.mxu0 %v673
    %677 = vmatprep.subr.bf16.mxu0 0
    %678 = vmatpush1.bf16.msra.mxu0 0
    %679 = vmatprep.subr.bf16.mxu0 0
    %680 = vmatpush1.bf16.msra.mxu0 0
    %681 = vmatprep.subr.bf16.mxu0 0
    %682 = vmatpush1.bf16.msra.mxu0 0
    %683 = vmatprep.subr.bf16.mxu0 0
    %684 = vmatpush1.bf16.msra.mxu0 0
    %685 = vmatprep.subr.bf16.mxu0 0
    %686 = vmatpush1.bf16.msra.mxu0 0
    %687 = vmatprep.subr.bf16.mxu0 0
    %688 = vmatpush1.bf16.msra.mxu0 0
    %689 = vmatprep.subr.bf16.mxu0 0
    %690 = vmatpush1.bf16.msra.mxu0 0
    %691 = vmatprep.subr.bf16.mxu0 0
    %692 = vmatpush1.bf16.msra.mxu0 0
    %693 = vmatprep.subr.bf16.mxu0 0
    %694 = vmatpush1.bf16.msra.mxu0 0
    %695 = vmatprep.subr.bf16.mxu0 0
    %696 = vmatpush1.bf16.msra.mxu0 0
    %697 = vmatprep.subr.bf16.mxu0 0
    %698 = vmatpush1.bf16.msra.mxu0 0
    %699 = vmatprep.subr.bf16.mxu0 0
    %700 = vmatpush1.bf16.msra.mxu0 0
    %701 = vmatprep.subr.bf16.mxu0 0
    %702 = vmatpush1.bf16.msra.mxu0 0
    %703 = vmatprep.subr.bf16.mxu0 0
    %704 = vmatpush1.bf16.msra.mxu0 0
    %705 = vmatprep.subr.bf16.mxu0 0
    %706 = vmatpush1.bf16.msra.mxu0 0
    %707 = vmatprep.mubr.bf16.mxu0 0
    %708 = vmatmul.mubr.bf16.gmra.mrb[0].mxu0 %v480
    %v709 = vpop.f32.mrb[0].mxu0
    %v710 = vadd.f32 %v156, %v709
    %v711 = vpop.f32.mrb[0].mxu0
    %v712 = vpop.f32.mrb[0].mxu0
    %v713 = vadd.f32 %v156, %v712
    %v714 = vpop.f32.mrb[0].mxu0
    %715 = vmatprep.mubr.bf16.mxu0 0
    %716 = vmatmul.mubr.bf16.gmra.mrb[0].mxu0 %v483
    %v717 = vpop.f32.mrb[0].mxu0
    %v718 = vadd.f32 %v156, %v717
    %v719 = vpop.f32.mrb[0].mxu0
    %v720 = vpop.f32.mrb[0].mxu0
    %v721 = vadd.f32 %v156, %v720
    %v722 = vpop.f32.mrb[0].mxu0
    %723 = vmatprep.mubr.bf16.mxu0 0
    %724 = vmatmul.mubr.bf16.gmra.mrb[0].mxu0 %v486
    %v725 = vpop.f32.mrb[0].mxu0
    %v726 = vadd.f32 %v156, %v725
    %v727 = vpop.f32.mrb[0].mxu0
    %v728 = vpop.f32.mrb[0].mxu0
    %v729 = vadd.f32 %v156, %v728
    %v730 = vpop.f32.mrb[0].mxu0
    %731 = vmatprep.mubr.bf16.mxu0 0
    %732 = vmatmul.mubr.bf16.gmra.mrb[0].mxu0 %v489
    %v733 = vpop.f32.mrb[0].mxu0
    %v734 = vadd.f32 %v156, %v733
    %v735 = vpop.f32.mrb[0].mxu0
    %v736 = vpop.f32.mrb[0].mxu0
    %v737 = vadd.f32 %v156, %v736
    %v738 = vpop.f32.mrb[0].mxu0
    %739 = vmatprep.mubr.bf16.mxu0 0
    %740 = vmatmul.mubr.bf16.gmra.mrb[0].mxu0 %v492
    %v741 = vpop.f32.mrb[0].mxu0
    %v742 = vadd.f32 %v156, %v741
    %v743 = vpop.f32.mrb[0].mxu0
    %v744 = vpop.f32.mrb[0].mxu0
    %v745 = vadd.f32 %v156, %v744
    %v746 = vpop.f32.mrb[0].mxu0
    %747 = vmatprep.mubr.bf16.mxu0 0
    %748 = vmatmul.mubr.bf16.gmra.mrb[0].mxu0 %v495
    %v749 = vpop.f32.mrb[0].mxu0
    %v750 = vadd.f32 %v156, %v749
    %v751 = vpop.f32.mrb[0].mxu0
    %v752 = vpop.f32.mrb[0].mxu0
    %v753 = vadd.f32 %v156, %v752
    %v754 = vpop.f32.mrb[0].mxu0
    %755 = vmatprep.mubr.bf16.mxu0 0
    %756 = vmatmul.mubr.bf16.gmra.mrb[0].mxu0 %v498
    %v757 = vpop.f32.mrb[0].mxu0
    %v758 = vadd.f32 %v156, %v757
    %v759 = vpop.f32.mrb[0].mxu0
    %v760 = vpop.f32.mrb[0].mxu0
    %v761 = vadd.f32 %v156, %v760
    %v762 = vpop.f32.mrb[0].mxu0
    %763 = vmatprep.mubr.bf16.mxu0 0
    %764 = vmatmul.mubr.bf16.gmra.mrb[0].mxu0 %v501
    %v765 = vpop.f32.mrb[0].mxu0
    %v766 = vadd.f32 %v156, %v765
    %v767 = vpop.f32.mrb[0].mxu0
    %v768 = vpop.f32.mrb[0].mxu0
    %v769 = vadd.f32 %v156, %v768
    %v770 = vpop.f32.mrb[0].mxu0
    %771 = vmatprep.mubr.bf16.mxu0 0
    %772 = vmatmul.mubr.bf16.gmra.mrb[0].mxu0 %v504
    %v773 = vpop.f32.mrb[0].mxu0
    %v774 = vadd.f32 %v156, %v773
    %v775 = vpop.f32.mrb[0].mxu0
    %v776 = vpop.f32.mrb[0].mxu0
    %v777 = vadd.f32 %v156, %v776
    %v778 = vpop.f32.mrb[0].mxu0
    %779 = vmatprep.mubr.bf16.mxu0 0
    %780 = vmatmul.mubr.bf16.gmra.mrb[0].mxu0 %v507
    %v781 = vpop.f32.mrb[0].mxu0
    %v782 = vadd.f32 %v156, %v781
    %v783 = vpop.f32.mrb[0].mxu0
    %v784 = vpop.f32.mrb[0].mxu0
    %v785 = vadd.f32 %v156, %v784
    %v786 = vpop.f32.mrb[0].mxu0
    %787 = vmatprep.mubr.bf16.mxu0 0
    %788 = vmatmul.mubr.bf16.gmra.mrb[0].mxu0 %v510
    %v789 = vpop.f32.mrb[0].mxu0
    %v790 = vadd.f32 %v156, %v789
    %v791 = vpop.f32.mrb[0].mxu0
    %v792 = vpop.f32.mrb[0].mxu0
    %v793 = vadd.f32 %v156, %v792
    %v794 = vpop.f32.mrb[0].mxu0
    %795 = vmatprep.mubr.bf16.mxu0 0
    %796 = vmatmul.mubr.bf16.gmra.mrb[0].mxu0 %v513
    %v797 = vpop.f32.mrb[0].mxu0
    %v798 = vadd.f32 %v156, %v797
    %v799 = vpop.f32.mrb[0].mxu0
    %v800 = vpop.f32.mrb[0].mxu0
    %v801 = vadd.f32 %v156, %v800
    %v802 = vpop.f32.mrb[0].mxu0
    %803 = vmatprep.mubr.bf16.mxu0 0
    %804 = vmatmul.mubr.bf16.gmra.mrb[0].mxu0 %v516
    %v805 = vpop.f32.mrb[0].mxu0
    %v806 = vadd.f32 %v156, %v805
    %v807 = vpop.f32.mrb[0].mxu0
    %v808 = vpop.f32.mrb[0].mxu0
    %v809 = vadd.f32 %v156, %v808
    %v810 = vpop.f32.mrb[0].mxu0
    %811 = vmatprep.mubr.bf16.mxu0 0
    %812 = vmatmul.mubr.bf16.gmra.mrb[0].mxu0 %v519
    %v813 = vpop.f32.mrb[0].mxu0
    %v814 = vadd.f32 %v156, %v813
    %v815 = vpop.f32.mrb[0].mxu0
    %v816 = vpop.f32.mrb[0].mxu0
    %v817 = vadd.f32 %v156, %v816
    %v818 = vpop.f32.mrb[0].mxu0
    %819 = vmatprep.mubr.bf16.mxu0 0
    %820 = vmatmul.mubr.bf16.gmra.mrb[0].mxu0 %v522
    %v821 = vpop.f32.mrb[0].mxu0
    %v822 = vadd.f32 %v156, %v821
    %v823 = vpop.f32.mrb[0].mxu0
    %v824 = vpop.f32.mrb[0].mxu0
    %v825 = vadd.f32 %v156, %v824
    %v826 = vpop.f32.mrb[0].mxu0
    %827 = vmatprep.mubr.bf16.mxu0 0
    %828 = vmatmul.mubr.bf16.gmra.mrb[0].mxu0 %v525
    %v829 = vpop.f32.mrb[0].mxu0
    %v830 = vadd.f32 %v156, %v829
    %v831 = vpop.f32.mrb[0].mxu0
    %v832 = vpop.f32.mrb[0].mxu0
    %v833 = vadd.f32 %v156, %v832
    %v834 = vpop.f32.mrb[0].mxu0
    %835 = vmatprep.mubr.bf16.mxu0 0
    %836 = vmatmul.mubr.bf16.gmra.mrb[0].mxu0 %v528
    %v837 = vpop.f32.mrb[0].mxu0
    %v838 = vadd.f32 %v156, %v837
    %v839 = vpop.f32.mrb[0].mxu0
    %v840 = vpop.f32.mrb[0].mxu0
    %v841 = vadd.f32 %v156, %v840
    %v842 = vpop.f32.mrb[0].mxu0
    %843 = vmatprep.mubr.bf16.mxu0 0
    %844 = vmatmul.mubr.bf16.gmra.mrb[0].mxu0 %v531
    %v845 = vpop.f32.mrb[0].mxu0
    %v846 = vadd.f32 %v156, %v845
    %v847 = vpop.f32.mrb[0].mxu0
    %v848 = vpop.f32.mrb[0].mxu0
    %v849 = vadd.f32 %v156, %v848
    %v850 = vpop.f32.mrb[0].mxu0
    %851 = vmatprep.mubr.bf16.mxu0 0
    %852 = vmatmul.mubr.bf16.gmra.mrb[0].mxu0 %v534
    %v853 = vpop.f32.mrb[0].mxu0
    %v854 = vadd.f32 %v156, %v853
    %v855 = vpop.f32.mrb[0].mxu0
    %v856 = vpop.f32.mrb[0].mxu0
    %v857 = vadd.f32 %v156, %v856
    %v858 = vpop.f32.mrb[0].mxu0
    %859 = vmatprep.mubr.bf16.mxu0 0
    %860 = vmatmul.mubr.bf16.gmra.mrb[0].mxu0 %v537
    %v861 = vpop.f32.mrb[0].mxu0
    %v862 = vadd.f32 %v156, %v861
    %v863 = vpop.f32.mrb[0].mxu0
    %v864 = vpop.f32.mrb[0].mxu0
    %v865 = vadd.f32 %v156, %v864
    %v866 = vpop.f32.mrb[0].mxu0
    %867 = vmatprep.mubr.bf16.mxu0 0
    %868 = vmatmul.mubr.bf16.gmra.mrb[0].mxu0 %v540
    %v869 = vpop.f32.mrb[0].mxu0
    %v870 = vadd.f32 %v156, %v869
    %v871 = vpop.f32.mrb[0].mxu0
    %v872 = vpop.f32.mrb[0].mxu0
    %v873 = vadd.f32 %v156, %v872
    %v874 = vpop.f32.mrb[0].mxu0
    %875 = vmatprep.mubr.bf16.mxu0 0
    %876 = vmatmul.mubr.bf16.gmra.mrb[0].mxu0 %v543
    %v877 = vpop.f32.mrb[0].mxu0
    %v878 = vadd.f32 %v156, %v877
    %v879 = vpop.f32.mrb[0].mxu0
    %v880 = vpop.f32.mrb[0].mxu0
    %v881 = vadd.f32 %v156, %v880
    %v882 = vpop.f32.mrb[0].mxu0
    %883 = vmatprep.mubr.bf16.mxu0 0
    %884 = vmatmul.mubr.bf16.gmra.mrb[0].mxu0 %v546
    %v885 = vpop.f32.mrb[0].mxu0
    %v886 = vadd.f32 %v156, %v885
    %v887 = vpop.f32.mrb[0].mxu0
    %v888 = vpop.f32.mrb[0].mxu0
    %v889 = vadd.f32 %v156, %v888
    %v890 = vpop.f32.mrb[0].mxu0
    %891 = vmatprep.mubr.bf16.mxu0 0
    %892 = vmatmul.mubr.bf16.gmra.mrb[0].mxu0 %v549
    %v893 = vpop.f32.mrb[0].mxu0
    %v894 = vadd.f32 %v156, %v893
    %v895 = vpop.f32.mrb[0].mxu0
    %v896 = vpop.f32.mrb[0].mxu0
    %v897 = vadd.f32 %v156, %v896
    %v898 = vpop.f32.mrb[0].mxu0
    %899 = vmatprep.mubr.bf16.mxu0 0
    %900 = vmatmul.mubr.bf16.gmra.mrb[0].mxu0 %v552
    %v901 = vpop.f32.mrb[0].mxu0
    %v902 = vadd.f32 %v156, %v901
    %v903 = vpop.f32.mrb[0].mxu0
    %v904 = vpop.f32.mrb[0].mxu0
    %v905 = vadd.f32 %v156, %v904
    %v906 = vpop.f32.mrb[0].mxu0
    %907 = vmatprep.mubr.bf16.mxu0 0
    %908 = vmatmul.mubr.bf16.gmra.mrb[0].mxu0 %v555
    %v909 = vpop.f32.mrb[0].mxu0
    %v910 = vadd.f32 %v156, %v909
    %v911 = vpop.f32.mrb[0].mxu0
    %v912 = vpop.f32.mrb[0].mxu0
    %v913 = vadd.f32 %v156, %v912
    %v914 = vpop.f32.mrb[0].mxu0
    %915 = vmatprep.mubr.bf16.mxu0 0
    %916 = vmatmul.mubr.bf16.gmra.mrb[0].mxu0 %v558
    %v917 = vpop.f32.mrb[0].mxu0
    %v918 = vadd.f32 %v156, %v917
    %v919 = vpop.f32.mrb[0].mxu0
    %v920 = vpop.f32.mrb[0].mxu0
    %v921 = vadd.f32 %v156, %v920
    %v922 = vpop.f32.mrb[0].mxu0
    %923 = vmatprep.mubr.bf16.mxu0 0
    %924 = vmatmul.mubr.bf16.gmra.mrb[0].mxu0 %v561
    %v925 = vpop.f32.mrb[0].mxu0
    %v926 = vadd.f32 %v156, %v925
    %v927 = vpop.f32.mrb[0].mxu0
    %v928 = vpop.f32.mrb[0].mxu0
    %v929 = vadd.f32 %v156, %v928
    %v930 = vpop.f32.mrb[0].mxu0
    %931 = vmatprep.mubr.bf16.mxu0 0
    %932 = vmatmul.mubr.bf16.gmra.mrb[0].mxu0 %v564
    %v933 = vpop.f32.mrb[0].mxu0
    %v934 = vadd.f32 %v156, %v933
    %v935 = vpop.f32.mrb[0].mxu0
    %v936 = vpop.f32.mrb[0].mxu0
    %v937 = vadd.f32 %v156, %v936
    %v938 = vpop.f32.mrb[0].mxu0
    %939 = vmatprep.mubr.bf16.mxu0 0
    %940 = vmatmul.mubr.bf16.gmra.mrb[0].mxu0 %v567
    %v941 = vpop.f32.mrb[0].mxu0
    %v942 = vadd.f32 %v156, %v941
    %v943 = vpop.f32.mrb[0].mxu0
    %v944 = vpop.f32.mrb[0].mxu0
    %v945 = vadd.f32 %v156, %v944
    %v946 = vpop.f32.mrb[0].mxu0
    %947 = vmatprep.mubr.bf16.mxu0 0
    %948 = vmatmul.mubr.bf16.gmra.mrb[0].mxu0 %v570
    %v949 = vpop.f32.mrb[0].mxu0
    %v950 = vadd.f32 %v156, %v949
    %v951 = vpop.f32.mrb[0].mxu0
    %v952 = vpop.f32.mrb[0].mxu0
    %v953 = vadd.f32 %v156, %v952
    %v954 = vpop.f32.mrb[0].mxu0
    %955 = vmatprep.mubr.bf16.mxu0 0
    %956 = vmatmul.mubr.bf16.gmra.mrb[0].mxu0 %v573
    %v957 = vpop.f32.mrb[0].mxu0
    %v958 = vadd.f32 %v156, %v957
    %v959 = vpop.f32.mrb[0].mxu0
    %v960 = vpop.f32.mrb[0].mxu0
    %v961 = vadd.f32 %v156, %v960
    %v962 = vpop.f32.mrb[0].mxu0
    %963 = vmatprep.mubr.bf16.mxu0 0
    %964 = vmatmul.mubr.bf16.gmra.mrb[0].mxu0 %v576
    %v965 = vpop.f32.mrb[0].mxu0
    %v966 = vadd.f32 %v156, %v965
    %v967 = vpop.f32.mrb[0].mxu0
    %v968 = vpop.f32.mrb[0].mxu0
    %v969 = vadd.f32 %v156, %v968
    %v970 = vpop.f32.mrb[0].mxu0
    %971 = vmatprep.mubr.bf16.mxu0 0
    %972 = vmatmul.mubr.bf16.gmra.mrb[0].mxu0 %v579
    %v973 = vpop.f32.mrb[0].mxu0
    %v974 = vadd.f32 %v156, %v973
    %v975 = vpop.f32.mrb[0].mxu0
    %v976 = vpop.f32.mrb[0].mxu0
    %v977 = vadd.f32 %v156, %v976
    %v978 = vpop.f32.mrb[0].mxu0
    %979 = vmatprep.mubr.bf16.mxu0 0
    %980 = vmatmul.mubr.bf16.gmra.mrb[0].mxu0 %v582
    %v981 = vpop.f32.mrb[0].mxu0
    %v982 = vadd.f32 %v156, %v981
    %v983 = vpop.f32.mrb[0].mxu0
    %v984 = vpop.f32.mrb[0].mxu0
    %v985 = vadd.f32 %v156, %v984
    %v986 = vpop.f32.mrb[0].mxu0
    %987 = vmatprep.mubr.bf16.mxu0 0
    %988 = vmatmul.mubr.bf16.gmra.mrb[0].mxu0 %v585
    %v989 = vpop.f32.mrb[0].mxu0
    %v990 = vadd.f32 %v156, %v989
    %v991 = vpop.f32.mrb[0].mxu0
    %v992 = vpop.f32.mrb[0].mxu0
    %v993 = vadd.f32 %v156, %v992
    %v994 = vpop.f32.mrb[0].mxu0
    %995 = vmatprep.mubr.bf16.mxu0 0
    %996 = vmatmul.mubr.bf16.gmra.mrb[0].mxu0 %v588
    %v997 = vpop.f32.mrb[0].mxu0
    %v998 = vadd.f32 %v156, %v997
    %v999 = vpop.f32.mrb[0].mxu0
    %v1000 = vpop.f32.mrb[0].mxu0
    %v1001 = vadd.f32 %v156, %v1000
    %v1002 = vpop.f32.mrb[0].mxu0
    %1003 = vmatprep.mubr.bf16.mxu0 0
    %1004 = vmatmul.mubr.bf16.gmra.mrb[0].mxu0 %v591
    %v1005 = vpop.f32.mrb[0].mxu0
    %v1006 = vadd.f32 %v156, %v1005
    %v1007 = vpop.f32.mrb[0].mxu0
    %v1008 = vpop.f32.mrb[0].mxu0
    %v1009 = vadd.f32 %v156, %v1008
    %v1010 = vpop.f32.mrb[0].mxu0
    %1011 = vmatprep.mubr.bf16.mxu0 0
    %1012 = vmatmul.mubr.bf16.gmra.mrb[0].mxu0 %v594
    %v1013 = vpop.f32.mrb[0].mxu0
    %v1014 = vadd.f32 %v156, %v1013
    %v1015 = vpop.f32.mrb[0].mxu0
    %v1016 = vpop.f32.mrb[0].mxu0
    %v1017 = vadd.f32 %v156, %v1016
    %v1018 = vpop.f32.mrb[0].mxu0
    %1019 = vmatprep.mubr.bf16.mxu0 0
    %1020 = vmatmul.mubr.bf16.gmra.mrb[0].mxu0 %v597
    %v1021 = vpop.f32.mrb[0].mxu0
    %v1022 = vadd.f32 %v156, %v1021
    %v1023 = vpop.f32.mrb[0].mxu0
    %v1024 = vpop.f32.mrb[0].mxu0
    %v1025 = vadd.f32 %v156, %v1024
    %v1026 = vpop.f32.mrb[0].mxu0
    %1027 = vmatprep.mubr.bf16.mxu0 0
    %1028 = vmatmul.mubr.bf16.gmra.mrb[0].mxu0 %v600
    %v1029 = vpop.f32.mrb[0].mxu0
    %v1030 = vadd.f32 %v156, %v1029
    %v1031 = vpop.f32.mrb[0].mxu0
    %v1032 = vpop.f32.mrb[0].mxu0
    %v1033 = vadd.f32 %v156, %v1032
    %v1034 = vpop.f32.mrb[0].mxu0
    %1035 = vmatprep.mubr.bf16.mxu0 0
    %1036 = vmatmul.mubr.bf16.gmra.mrb[0].mxu0 %v603
    %v1037 = vpop.f32.mrb[0].mxu0
    %v1038 = vadd.f32 %v156, %v1037
    %v1039 = vpop.f32.mrb[0].mxu0
    %v1040 = vpop.f32.mrb[0].mxu0
    %v1041 = vadd.f32 %v156, %v1040
    %v1042 = vpop.f32.mrb[0].mxu0
    %1043 = vmatprep.mubr.bf16.mxu0 0
    %1044 = vmatmul.mubr.bf16.gmra.mrb[0].mxu0 %v606
    %v1045 = vpop.f32.mrb[0].mxu0
    %v1046 = vadd.f32 %v156, %v1045
    %v1047 = vpop.f32.mrb[0].mxu0
    %v1048 = vpop.f32.mrb[0].mxu0
    %v1049 = vadd.f32 %v156, %v1048
    %v1050 = vpop.f32.mrb[0].mxu0
    %1051 = vmatprep.mubr.bf16.mxu0 0
    %1052 = vmatmul.mubr.bf16.gmra.mrb[0].mxu0 %v609
    %v1053 = vpop.f32.mrb[0].mxu0
    %v1054 = vadd.f32 %v156, %v1053
    %v1055 = vpop.f32.mrb[0].mxu0
    %v1056 = vpop.f32.mrb[0].mxu0
    %v1057 = vadd.f32 %v156, %v1056
    %v1058 = vpop.f32.mrb[0].mxu0
    %1059 = vmatprep.mubr.bf16.mxu0 0
    %1060 = vmatmul.mubr.bf16.gmra.mrb[0].mxu0 %v612
    %v1061 = vpop.f32.mrb[0].mxu0
    %v1062 = vadd.f32 %v156, %v1061
    %v1063 = vpop.f32.mrb[0].mxu0
    %v1064 = vpop.f32.mrb[0].mxu0
    %v1065 = vadd.f32 %v156, %v1064
    %v1066 = vpop.f32.mrb[0].mxu0
    %1067 = vmatprep.mubr.bf16.mxu0 0
    %1068 = vmatmul.mubr.bf16.gmra.mrb[0].mxu0 %v615
    %v1069 = vpop.f32.mrb[0].mxu0
    %v1070 = vadd.f32 %v156, %v1069
    %v1071 = vpop.f32.mrb[0].mxu0
    %v1072 = vpop.f32.mrb[0].mxu0
    %v1073 = vadd.f32 %v156, %v1072
    %v1074 = vpop.f32.mrb[0].mxu0
    %1075 = vmatprep.mubr.bf16.mxu0 0
    %1076 = vmatmul.mubr.bf16.gmra.mrb[0].mxu0 %v618
    %v1077 = vpop.f32.mrb[0].mxu0
    %v1078 = vadd.f32 %v156, %v1077
    %v1079 = vpop.f32.mrb[0].mxu0
    %v1080 = vpop.f32.mrb[0].mxu0
    %v1081 = vadd.f32 %v156, %v1080
    %v1082 = vpop.f32.mrb[0].mxu0
    %1083 = vmatprep.mubr.bf16.mxu0 0
    %1084 = vmatmul.mubr.bf16.gmra.mrb[0].mxu0 %v621
    %v1085 = vpop.f32.mrb[0].mxu0
    %v1086 = vadd.f32 %v156, %v1085
    %v1087 = vpop.f32.mrb[0].mxu0
    %v1088 = vpop.f32.mrb[0].mxu0
    %v1089 = vadd.f32 %v156, %v1088
    %v1090 = vpop.f32.mrb[0].mxu0
    %1091 = vmatprep.mubr.bf16.mxu0 0
    %1092 = vmatmul.mubr.bf16.gmra.mrb[0].mxu0 %v624
    %v1093 = vpop.f32.mrb[0].mxu0
    %v1094 = vadd.f32 %v156, %v1093
    %v1095 = vpop.f32.mrb[0].mxu0
    %v1096 = vpop.f32.mrb[0].mxu0
    %v1097 = vadd.f32 %v156, %v1096
    %v1098 = vpop.f32.mrb[0].mxu0
    %1099 = vmatprep.mubr.bf16.mxu0 0
    %1100 = vmatmul.mubr.bf16.gmra.mrb[0].mxu0 %v627
    %v1101 = vpop.f32.mrb[0].mxu0
    %v1102 = vadd.f32 %v156, %v1101
    %v1103 = vpop.f32.mrb[0].mxu0
    %v1104 = vpop.f32.mrb[0].mxu0
    %v1105 = vadd.f32 %v156, %v1104
    %v1106 = vpop.f32.mrb[0].mxu0
    %1107 = vmatprep.mubr.bf16.mxu0 0
    %1108 = vmatmul.mubr.bf16.gmra.mrb[0].mxu0 %v630
    %v1109 = vpop.f32.mrb[0].mxu0
    %v1110 = vadd.f32 %v156, %v1109
    %v1111 = vpop.f32.mrb[0].mxu0
    %v1112 = vpop.f32.mrb[0].mxu0
    %v1113 = vadd.f32 %v156, %v1112
    %v1114 = vpop.f32.mrb[0].mxu0
    %1115 = vmatprep.mubr.bf16.mxu0 0
    %1116 = vmatmul.mubr.bf16.gmra.mrb[0].mxu0 %v633
    %v1117 = vpop.f32.mrb[0].mxu0
    %v1118 = vadd.f32 %v156, %v1117
    %v1119 = vpop.f32.mrb[0].mxu0
    %v1120 = vpop.f32.mrb[0].mxu0
    %v1121 = vadd.f32 %v156, %v1120
    %v1122 = vpop.f32.mrb[0].mxu0
    %1123 = vmatprep.mubr.bf16.mxu0 0
    %1124 = vmatmul.mubr.bf16.gmra.mrb[0].mxu0 %v636
    %v1125 = vpop.f32.mrb[0].mxu0
    %v1126 = vadd.f32 %v156, %v1125
    %v1127 = vpop.f32.mrb[0].mxu0
    %v1128 = vpop.f32.mrb[0].mxu0
    %v1129 = vadd.f32 %v156, %v1128
    %v1130 = vpop.f32.mrb[0].mxu0
    %1131 = vmatprep.mubr.bf16.mxu0 0
    %1132 = vmatmul.mubr.bf16.gmra.mrb[0].mxu0 %v639
    %v1133 = vpop.f32.mrb[0].mxu0
    %v1134 = vadd.f32 %v156, %v1133
    %v1135 = vpop.f32.mrb[0].mxu0
    %v1136 = vpop.f32.mrb[0].mxu0
    %v1137 = vadd.f32 %v156, %v1136
    %v1138 = vpop.f32.mrb[0].mxu0
    %1139 = vmatprep.mubr.bf16.mxu0 0
    %1140 = vmatmul.mubr.bf16.gmra.mrb[0].mxu0 %v642
    %v1141 = vpop.f32.mrb[0].mxu0
    %v1142 = vadd.f32 %v156, %v1141
    %v1143 = vpop.f32.mrb[0].mxu0
    %v1144 = vpop.f32.mrb[0].mxu0
    %v1145 = vadd.f32 %v156, %v1144
    %v1146 = vpop.f32.mrb[0].mxu0
    %1147 = vmatprep.mubr.bf16.mxu0 0
    %1148 = vmatmul.mubr.bf16.gmra.mrb[0].mxu0 %v645
    %v1149 = vpop.f32.mrb[0].mxu0
    %v1150 = vadd.f32 %v156, %v1149
    %v1151 = vpop.f32.mrb[0].mxu0
    %v1152 = vpop.f32.mrb[0].mxu0
    %v1153 = vadd.f32 %v156, %v1152
    %v1154 = vpop.f32.mrb[0].mxu0
    %1155 = vmatprep.mubr.bf16.mxu0 0
    %1156 = vmatmul.mubr.bf16.gmra.mrb[0].mxu0 %v648
    %v1157 = vpop.f32.mrb[0].mxu0
    %v1158 = vadd.f32 %v156, %v1157
    %v1159 = vpop.f32.mrb[0].mxu0
    %v1160 = vpop.f32.mrb[0].mxu0
    %v1161 = vadd.f32 %v156, %v1160
    %v1162 = vpop.f32.mrb[0].mxu0
    %1163 = vmatprep.mubr.bf16.mxu0 0
    %1164 = vmatmul.mubr.bf16.gmra.mrb[0].mxu0 %v651
    %v1165 = vpop.f32.mrb[0].mxu0
    %v1166 = vadd.f32 %v156, %v1165
    %v1167 = vpop.f32.mrb[0].mxu0
    %v1168 = vpop.f32.mrb[0].mxu0
    %v1169 = vadd.f32 %v156, %v1168
    %v1170 = vpop.f32.mrb[0].mxu0
    %1171 = vmatprep.mubr.bf16.mxu0 0
    %1172 = vmatmul.mubr.bf16.gmra.mrb[0].mxu0 %v654
    %v1173 = vpop.f32.mrb[0].mxu0
    %v1174 = vadd.f32 %v156, %v1173
    %v1175 = vpop.f32.mrb[0].mxu0
    %v1176 = vpop.f32.mrb[0].mxu0
    %v1177 = vadd.f32 %v156, %v1176
    %v1178 = vpop.f32.mrb[0].mxu0
    %1179 = vmatprep.mubr.bf16.mxu0 0
    %1180 = vmatmul.mubr.bf16.gmra.mrb[0].mxu0 %v657
    %v1181 = vpop.f32.mrb[0].mxu0
    %v1182 = vadd.f32 %v156, %v1181
    %v1183 = vpop.f32.mrb[0].mxu0
    %v1184 = vpop.f32.mrb[0].mxu0
    %v1185 = vadd.f32 %v156, %v1184
    %v1186 = vpop.f32.mrb[0].mxu0
    %1187 = vmatprep.mubr.bf16.mxu0 0
    %1188 = vmatmul.mubr.bf16.gmra.mrb[0].mxu0 %v660
    %v1189 = vpop.f32.mrb[0].mxu0
    %v1190 = vadd.f32 %v156, %v1189
    %v1191 = vpop.f32.mrb[0].mxu0
    %v1192 = vpop.f32.mrb[0].mxu0
    %v1193 = vadd.f32 %v156, %v1192
    %v1194 = vpop.f32.mrb[0].mxu0
    %1195 = vmatprep.mubr.bf16.mxu0 0
    %1196 = vmatmul.mubr.bf16.gmra.mrb[0].mxu0 %v663
    %v1197 = vpop.f32.mrb[0].mxu0
    %v1198 = vadd.f32 %v156, %v1197
    %v1199 = vpop.f32.mrb[0].mxu0
    %v1200 = vpop.f32.mrb[0].mxu0
    %v1201 = vadd.f32 %v156, %v1200
    %v1202 = vpop.f32.mrb[0].mxu0
    %1203 = vmatprep.mubr.bf16.mxu0 0
    %1204 = vmatmul.mubr.bf16.gmra.mrb[0].mxu0 %v666
    %v1205 = vpop.f32.mrb[0].mxu0
    %v1206 = vadd.f32 %v156, %v1205
    %v1207 = vpop.f32.mrb[0].mxu0
    %v1208 = vpop.f32.mrb[0].mxu0
    %v1209 = vadd.f32 %v156, %v1208
    %v1210 = vpop.f32.mrb[0].mxu0
    %1211 = vmatprep.mubr.bf16.mxu0 0
    %1212 = vmatmul.mubr.bf16.gmra.mrb[0].mxu0 %v669
    %v1213 = vpop.f32.mrb[0].mxu0
    %v1214 = vadd.f32 %v156, %v1213
    %v1215 = vpop.f32.mrb[0].mxu0
    %v1216 = vpop.f32.mrb[0].mxu0
    %v1217 = vadd.f32 %v156, %v1216
    %v1218 = vpop.f32.mrb[0].mxu0
    %1219 = vdwg.mxu0
    %v1220 = vmax.f32 %v710, 0.0
    %v1221 = vmax.f32 %v713, 0.0
    %v1222 = vmax.f32 %v718, 0.0
    %v1223 = vmax.f32 %v721, 0.0
    %v1224 = vmax.f32 %v726, 0.0
    %v1225 = vmax.f32 %v729, 0.0
    %v1226 = vmax.f32 %v734, 0.0
    %v1227 = vmax.f32 %v737, 0.0
    %v1228 = vmax.f32 %v742, 0.0
    %v1229 = vmax.f32 %v745, 0.0
    %v1230 = vmax.f32 %v750, 0.0
    %v1231 = vmax.f32 %v753, 0.0
    %v1232 = vmax.f32 %v758, 0.0
    %v1233 = vmax.f32 %v761, 0.0
    %v1234 = vmax.f32 %v766, 0.0
    %v1235 = vmax.f32 %v769, 0.0
    %v1236 = vmax.f32 %v774, 0.0
    %v1237 = vmax.f32 %v777, 0.0
    %v1238 = vmax.f32 %v782, 0.0
    %v1239 = vmax.f32 %v785, 0.0
    %v1240 = vmax.f32 %v790, 0.0
    %v1241 = vmax.f32 %v793, 0.0
    %v1242 = vmax.f32 %v798, 0.0
    %v1243 = vmax.f32 %v801, 0.0
    %v1244 = vmax.f32 %v806, 0.0
    %v1245 = vmax.f32 %v809, 0.0
    %v1246 = vmax.f32 %v814, 0.0
    %v1247 = vmax.f32 %v817, 0.0
    %v1248 = vmax.f32 %v822, 0.0
    %v1249 = vmax.f32 %v825, 0.0
    %v1250 = vmax.f32 %v830, 0.0
    %v1251 = vmax.f32 %v833, 0.0
    %v1252 = vmax.f32 %v838, 0.0
    %v1253 = vmax.f32 %v841, 0.0
    %v1254 = vmax.f32 %v846, 0.0
    %v1255 = vmax.f32 %v849, 0.0
    %v1256 = vmax.f32 %v854, 0.0
    %v1257 = vmax.f32 %v857, 0.0
    %v1258 = vmax.f32 %v862, 0.0
    %v1259 = vmax.f32 %v865, 0.0
    %v1260 = vmax.f32 %v870, 0.0
    %v1261 = vmax.f32 %v873, 0.0
    %v1262 = vmax.f32 %v878, 0.0
    %v1263 = vmax.f32 %v881, 0.0
    %v1264 = vmax.f32 %v886, 0.0
    %v1265 = vmax.f32 %v889, 0.0
    %v1266 = vmax.f32 %v894, 0.0
    %v1267 = vmax.f32 %v897, 0.0
    %v1268 = vmax.f32 %v902, 0.0
    %v1269 = vmax.f32 %v905, 0.0
    %v1270 = vmax.f32 %v910, 0.0
    %v1271 = vmax.f32 %v913, 0.0
    %v1272 = vmax.f32 %v918, 0.0
    %v1273 = vmax.f32 %v921, 0.0
    %v1274 = vmax.f32 %v926, 0.0
    %v1275 = vmax.f32 %v929, 0.0
    %v1276 = vmax.f32 %v934, 0.0
    %v1277 = vmax.f32 %v937, 0.0
    %v1278 = vmax.f32 %v942, 0.0
    %v1279 = vmax.f32 %v945, 0.0
    %v1280 = vmax.f32 %v950, 0.0
    %v1281 = vmax.f32 %v953, 0.0
    %v1282 = vmax.f32 %v958, 0.0
    %v1283 = vmax.f32 %v961, 0.0
    %v1284 = vmax.f32 %v966, 0.0
    %v1285 = vmax.f32 %v969, 0.0
    %v1286 = vmax.f32 %v974, 0.0
    %v1287 = vmax.f32 %v977, 0.0
    %v1288 = vmax.f32 %v982, 0.0
    %v1289 = vmax.f32 %v985, 0.0
    %v1290 = vmax.f32 %v990, 0.0
    %v1291 = vmax.f32 %v993, 0.0
    %v1292 = vmax.f32 %v998, 0.0
    %v1293 = vmax.f32 %v1001, 0.0
    %v1294 = vmax.f32 %v1006, 0.0
    %v1295 = vmax.f32 %v1009, 0.0
    %v1296 = vmax.f32 %v1014, 0.0
    %v1297 = vmax.f32 %v1017, 0.0
    %v1298 = vmax.f32 %v1022, 0.0
    %v1299 = vmax.f32 %v1025, 0.0
    %v1300 = vmax.f32 %v1030, 0.0
    %v1301 = vmax.f32 %v1033, 0.0
    %v1302 = vmax.f32 %v1038, 0.0
    %v1303 = vmax.f32 %v1041, 0.0
    %v1304 = vmax.f32 %v1046, 0.0
    %v1305 = vmax.f32 %v1049, 0.0
    %v1306 = vmax.f32 %v1054, 0.0
    %v1307 = vmax.f32 %v1057, 0.0
    %v1308 = vmax.f32 %v1062, 0.0
    %v1309 = vmax.f32 %v1065, 0.0
    %v1310 = vmax.f32 %v1070, 0.0
    %v1311 = vmax.f32 %v1073, 0.0
    %v1312 = vmax.f32 %v1078, 0.0
    %v1313 = vmax.f32 %v1081, 0.0
    %v1314 = vmax.f32 %v1086, 0.0
    %v1315 = vmax.f32 %v1089, 0.0
    %v1316 = vmax.f32 %v1094, 0.0
    %v1317 = vmax.f32 %v1097, 0.0
    %v1318 = vmax.f32 %v1102, 0.0
    %v1319 = vmax.f32 %v1105, 0.0
    %v1320 = vmax.f32 %v1110, 0.0
    %v1321 = vmax.f32 %v1113, 0.0
    %v1322 = vmax.f32 %v1118, 0.0
    %v1323 = vmax.f32 %v1121, 0.0
    %v1324 = vmax.f32 %v1126, 0.0
    %v1325 = vmax.f32 %v1129, 0.0
    %v1326 = vmax.f32 %v1134, 0.0
    %v1327 = vmax.f32 %v1137, 0.0
    %v1328 = vmax.f32 %v1142, 0.0
    %v1329 = vmax.f32 %v1145, 0.0
    %v1330 = vmax.f32 %v1150, 0.0
    %v1331 = vmax.f32 %v1153, 0.0
    %v1332 = vmax.f32 %v1158, 0.0
    %v1333 = vmax.f32 %v1161, 0.0
    %v1334 = vmax.f32 %v1166, 0.0
    %v1335 = vmax.f32 %v1169, 0.0
    %v1336 = vmax.f32 %v1174, 0.0
    %v1337 = vmax.f32 %v1177, 0.0
    %v1338 = vmax.f32 %v1182, 0.0
    %v1339 = vmax.f32 %v1185, 0.0
    %v1340 = vmax.f32 %v1190, 0.0
    %v1341 = vmax.f32 %v1193, 0.0
    %v1342 = vmax.f32 %v1198, 0.0
    %v1343 = vmax.f32 %v1201, 0.0
    %v1344 = vmax.f32 %v1206, 0.0
    %v1345 = vmax.f32 %v1209, 0.0
    %v1346 = vmax.f32 %v1214, 0.0
    %v1347 = vmax.f32 %v1217, 0.0
    %v1348 = vpack.c.bf16 %v1221, %v1220
    %v1349 = vpack.c.bf16 %v1223, %v1222
    %v1350 = vpack.c.bf16 %v1225, %v1224
    %v1351 = vpack.c.bf16 %v1227, %v1226
    %v1352 = vpack.c.bf16 %v1229, %v1228
    %v1353 = vpack.c.bf16 %v1231, %v1230
    %v1354 = vpack.c.bf16 %v1233, %v1232
    %v1355 = vpack.c.bf16 %v1235, %v1234
    %v1356 = vpack.c.bf16 %v1237, %v1236
    %v1357 = vpack.c.bf16 %v1239, %v1238
    %v1358 = vpack.c.bf16 %v1241, %v1240
    %v1359 = vpack.c.bf16 %v1243, %v1242
    %v1360 = vpack.c.bf16 %v1245, %v1244
    %v1361 = vpack.c.bf16 %v1247, %v1246
    %v1362 = vpack.c.bf16 %v1249, %v1248
    %v1363 = vpack.c.bf16 %v1251, %v1250
    %v1364 = vpack.c.bf16 %v1253, %v1252
    %v1365 = vpack.c.bf16 %v1255, %v1254
    %v1366 = vpack.c.bf16 %v1257, %v1256
    %v1367 = vpack.c.bf16 %v1259, %v1258
    %v1368 = vpack.c.bf16 %v1261, %v1260
    %v1369 = vpack.c.bf16 %v1263, %v1262
    %v1370 = vpack.c.bf16 %v1265, %v1264
    %v1371 = vpack.c.bf16 %v1267, %v1266
    %v1372 = vpack.c.bf16 %v1269, %v1268
    %v1373 = vpack.c.bf16 %v1271, %v1270
    %v1374 = vpack.c.bf16 %v1273, %v1272
    %v1375 = vpack.c.bf16 %v1275, %v1274
    %v1376 = vpack.c.bf16 %v1277, %v1276
    %v1377 = vpack.c.bf16 %v1279, %v1278
    %v1378 = vpack.c.bf16 %v1281, %v1280
    %v1379 = vpack.c.bf16 %v1283, %v1282
    %v1380 = vpack.c.bf16 %v1285, %v1284
    %v1381 = vpack.c.bf16 %v1287, %v1286
    %v1382 = vpack.c.bf16 %v1289, %v1288
    %v1383 = vpack.c.bf16 %v1291, %v1290
    %v1384 = vpack.c.bf16 %v1293, %v1292
    %v1385 = vpack.c.bf16 %v1295, %v1294
    %v1386 = vpack.c.bf16 %v1297, %v1296
    %v1387 = vpack.c.bf16 %v1299, %v1298
    %v1388 = vpack.c.bf16 %v1301, %v1300
    %v1389 = vpack.c.bf16 %v1303, %v1302
    %v1390 = vpack.c.bf16 %v1305, %v1304
    %v1391 = vpack.c.bf16 %v1307, %v1306
    %v1392 = vpack.c.bf16 %v1309, %v1308
    %v1393 = vpack.c.bf16 %v1311, %v1310
    %v1394 = vpack.c.bf16 %v1313, %v1312
    %v1395 = vpack.c.bf16 %v1315, %v1314
    %v1396 = vpack.c.bf16 %v1317, %v1316
    %v1397 = vpack.c.bf16 %v1319, %v1318
    %v1398 = vpack.c.bf16 %v1321, %v1320
    %v1399 = vpack.c.bf16 %v1323, %v1322
    %v1400 = vpack.c.bf16 %v1325, %v1324
    %v1401 = vpack.c.bf16 %v1327, %v1326
    %v1402 = vpack.c.bf16 %v1329, %v1328
    %v1403 = vpack.c.bf16 %v1331, %v1330
    %v1404 = vpack.c.bf16 %v1333, %v1332
    %v1405 = vpack.c.bf16 %v1335, %v1334
    %v1406 = vpack.c.bf16 %v1337, %v1336
    %v1407 = vpack.c.bf16 %v1339, %v1338
    %v1408 = vpack.c.bf16 %v1341, %v1340
    %v1409 = vpack.c.bf16 %v1343, %v1342
    %v1410 = vpack.c.bf16 %v1345, %v1344
    %v1411 = vpack.c.bf16 %v1347, %v1346
    %v1412 = vld [vmem:[%s3] sm:$0xf]
    %v1413 = vld [vmem:[%s3 + $0x4] sm:$0xf]
    %v1414 = vld [vmem:[%s3 + $0x8] sm:$0xf]
    %v1415 = vld [vmem:[%s3 + $0xc] sm:$0xf]
    %v1416 = vld [vmem:[%s4] sm:$0x1]
    %v1418 = vlaneseq
    %v1419 = vshrl.u32 %v1418, 7
    %v1420 = vsub.s32 0, %v1419
    %v1421 = vrot.slane %v1416, %v1420
    %v1427 = vunpack.c.l.b16 %v1412
    %v1428 = vunpack.c.l.b16 %v1413
    %v1429 = vunpack.c.l.b16 %v1414
    %v1430 = vunpack.c.l.b16 %v1415
    %v1431 = vpack.c.b16 %v1428, %v1427
    %v1432 = vpack.c.b16 %v1430, %v1429
    %vm1435 = vcmask 261120
    %v1437 = vsel %vm1435, %v1348, 0
    %v1440 = vsel %vm1435, %v1349, 0
    %v1443 = vsel %vm1435, %v1350, 0
    %v1446 = vsel %vm1435, %v1351, 0
    %v1449 = vsel %vm1435, %v1352, 0
    %v1452 = vsel %vm1435, %v1353, 0
    %v1455 = vsel %vm1435, %v1354, 0
    %v1458 = vsel %vm1435, %v1355, 0
    %v1461 = vsel %vm1435, %v1356, 0
    %v1464 = vsel %vm1435, %v1357, 0
    %v1467 = vsel %vm1435, %v1358, 0
    %v1470 = vsel %vm1435, %v1359, 0
    %v1473 = vsel %vm1435, %v1360, 0
    %v1476 = vsel %vm1435, %v1361, 0
    %v1479 = vsel %vm1435, %v1362, 0
    %v1482 = vsel %vm1435, %v1363, 0
    %v1485 = vsel %vm1435, %v1364, 0
    %v1488 = vsel %vm1435, %v1365, 0
    %v1491 = vsel %vm1435, %v1366, 0
    %v1494 = vsel %vm1435, %v1367, 0
    %v1497 = vsel %vm1435, %v1368, 0
    %v1500 = vsel %vm1435, %v1369, 0
    %v1503 = vsel %vm1435, %v1370, 0
    %v1506 = vsel %vm1435, %v1371, 0
    %v1509 = vsel %vm1435, %v1372, 0
    %v1512 = vsel %vm1435, %v1373, 0
    %v1515 = vsel %vm1435, %v1374, 0
    %v1518 = vsel %vm1435, %v1375, 0
    %v1521 = vsel %vm1435, %v1376, 0
    %v1524 = vsel %vm1435, %v1377, 0
    %v1527 = vsel %vm1435, %v1378, 0
    %v1530 = vsel %vm1435, %v1379, 0
    %v1533 = vsel %vm1435, %v1380, 0
    %v1536 = vsel %vm1435, %v1381, 0
    %v1539 = vsel %vm1435, %v1382, 0
    %v1542 = vsel %vm1435, %v1383, 0
    %v1545 = vsel %vm1435, %v1384, 0
    %v1548 = vsel %vm1435, %v1385, 0
    %v1551 = vsel %vm1435, %v1386, 0
    %v1554 = vsel %vm1435, %v1387, 0
    %v1557 = vsel %vm1435, %v1388, 0
    %v1560 = vsel %vm1435, %v1389, 0
    %v1563 = vsel %vm1435, %v1390, 0
    %v1566 = vsel %vm1435, %v1391, 0
    %v1569 = vsel %vm1435, %v1392, 0
    %v1572 = vsel %vm1435, %v1393, 0
    %v1575 = vsel %vm1435, %v1394, 0
    %v1578 = vsel %vm1435, %v1395, 0
    %v1581 = vsel %vm1435, %v1396, 0
    %v1584 = vsel %vm1435, %v1397, 0
    %v1587 = vsel %vm1435, %v1398, 0
    %v1590 = vsel %vm1435, %v1399, 0
    %v1593 = vsel %vm1435, %v1400, 0
    %v1596 = vsel %vm1435, %v1401, 0
    %v1599 = vsel %vm1435, %v1402, 0
    %v1602 = vsel %vm1435, %v1403, 0
    %v1605 = vsel %vm1435, %v1404, 0
    %v1608 = vsel %vm1435, %v1405, 0
    %v1611 = vsel %vm1435, %v1406, 0
    %v1614 = vsel %vm1435, %v1407, 0
    %v1617 = vsel %vm1435, %v1408, 0
    %v1620 = vsel %vm1435, %v1409, 0
    %v1623 = vsel %vm1435, %v1410, 0
    %v1626 = vsel %vm1435, %v1411, 0
    %1628 = vmatprep.subr.bf16.mxu0 0
    %1629 = vmatpush1.bf16.msra.mxu0 %v1431
    %1630 = vmatprep.subr.bf16.mxu0 0
    %1631 = vmatpush1.bf16.msra.mxu0 %v1432
    %1632 = vmatprep.subr.bf16.mxu0 0
    %1633 = vmatpush1.bf16.msra.mxu0 0
    %1634 = vmatprep.subr.bf16.mxu0 0
    %1635 = vmatpush1.bf16.msra.mxu0 0
    %1636 = vmatprep.subr.bf16.mxu0 0
    %1637 = vmatpush1.bf16.msra.mxu0 0
    %1638 = vmatprep.subr.bf16.mxu0 0
    %1639 = vmatpush1.bf16.msra.mxu0 0
    %1640 = vmatprep.subr.bf16.mxu0 0
    %1641 = vmatpush1.bf16.msra.mxu0 0
    %1642 = vmatprep.subr.bf16.mxu0 0
    %1643 = vmatpush1.bf16.msra.mxu0 0
    %1644 = vmatprep.subr.bf16.mxu0 0
    %1645 = vmatpush1.bf16.msra.mxu0 0
    %1646 = vmatprep.subr.bf16.mxu0 0
    %1647 = vmatpush1.bf16.msra.mxu0 0
    %1648 = vmatprep.subr.bf16.mxu0 0
    %1649 = vmatpush1.bf16.msra.mxu0 0
    %1650 = vmatprep.subr.bf16.mxu0 0
    %1651 = vmatpush1.bf16.msra.mxu0 0
    %1652 = vmatprep.subr.bf16.mxu0 0
    %1653 = vmatpush1.bf16.msra.mxu0 0
    %1654 = vmatprep.subr.bf16.mxu0 0
    %1655 = vmatpush1.bf16.msra.mxu0 0
    %1656 = vmatprep.subr.bf16.mxu0 0
    %1657 = vmatpush1.bf16.msra.mxu0 0
    %1658 = vmatprep.subr.bf16.mxu0 0
    %1659 = vmatpush1.bf16.msra.mxu0 0
    %1660 = vmatprep.mubr.bf16.mxu0 0
    %1661 = vmatmul.mubr.bf16.gmra.mrb[0].mxu0 %v1437
    %v1662 = vpop.f32.mrb[0].mxu0
    %v1663 = vadd.f32 %v1421, %v1662
    %v1664 = vpop.f32.mrb[0].mxu0
    %v1665 = vpop.f32.mrb[0].mxu0
    %v1666 = vadd.f32 %v1421, %v1665
    %v1667 = vpop.f32.mrb[0].mxu0
    %1668 = vmatprep.mubr.bf16.mxu0 0
    %1669 = vmatmul.mubr.bf16.gmra.mrb[0].mxu0 %v1440
    %v1670 = vpop.f32.mrb[0].mxu0
    %v1671 = vadd.f32 %v1421, %v1670
    %v1672 = vpop.f32.mrb[0].mxu0
    %v1673 = vpop.f32.mrb[0].mxu0
    %v1674 = vadd.f32 %v1421, %v1673
    %v1675 = vpop.f32.mrb[0].mxu0
    %1676 = vmatprep.mubr.bf16.mxu0 0
    %1677 = vmatmul.mubr.bf16.gmra.mrb[0].mxu0 %v1443
    %v1678 = vpop.f32.mrb[0].mxu0
    %v1679 = vadd.f32 %v1421, %v1678
    %v1680 = vpop.f32.mrb[0].mxu0
    %v1681 = vpop.f32.mrb[0].mxu0
    %v1682 = vadd.f32 %v1421, %v1681
    %v1683 = vpop.f32.mrb[0].mxu0
    %1684 = vmatprep.mubr.bf16.mxu0 0
    %1685 = vmatmul.mubr.bf16.gmra.mrb[0].mxu0 %v1446
    %v1686 = vpop.f32.mrb[0].mxu0
    %v1687 = vadd.f32 %v1421, %v1686
    %v1688 = vpop.f32.mrb[0].mxu0
    %v1689 = vpop.f32.mrb[0].mxu0
    %v1690 = vadd.f32 %v1421, %v1689
    %v1691 = vpop.f32.mrb[0].mxu0
    %1692 = vmatprep.mubr.bf16.mxu0 0
    %1693 = vmatmul.mubr.bf16.gmra.mrb[0].mxu0 %v1449
    %v1694 = vpop.f32.mrb[0].mxu0
    %v1695 = vadd.f32 %v1421, %v1694
    %v1696 = vpop.f32.mrb[0].mxu0
    %v1697 = vpop.f32.mrb[0].mxu0
    %v1698 = vadd.f32 %v1421, %v1697
    %v1699 = vpop.f32.mrb[0].mxu0
    %1700 = vmatprep.mubr.bf16.mxu0 0
    %1701 = vmatmul.mubr.bf16.gmra.mrb[0].mxu0 %v1452
    %v1702 = vpop.f32.mrb[0].mxu0
    %v1703 = vadd.f32 %v1421, %v1702
    %v1704 = vpop.f32.mrb[0].mxu0
    %v1705 = vpop.f32.mrb[0].mxu0
    %v1706 = vadd.f32 %v1421, %v1705
    %v1707 = vpop.f32.mrb[0].mxu0
    %1708 = vmatprep.mubr.bf16.mxu0 0
    %1709 = vmatmul.mubr.bf16.gmra.mrb[0].mxu0 %v1455
    %v1710 = vpop.f32.mrb[0].mxu0
    %v1711 = vadd.f32 %v1421, %v1710
    %v1712 = vpop.f32.mrb[0].mxu0
    %v1713 = vpop.f32.mrb[0].mxu0
    %v1714 = vadd.f32 %v1421, %v1713
    %v1715 = vpop.f32.mrb[0].mxu0
    %1716 = vmatprep.mubr.bf16.mxu0 0
    %1717 = vmatmul.mubr.bf16.gmra.mrb[0].mxu0 %v1458
    %v1718 = vpop.f32.mrb[0].mxu0
    %v1719 = vadd.f32 %v1421, %v1718
    %v1720 = vpop.f32.mrb[0].mxu0
    %v1721 = vpop.f32.mrb[0].mxu0
    %v1722 = vadd.f32 %v1421, %v1721
    %v1723 = vpop.f32.mrb[0].mxu0
    %1724 = vmatprep.mubr.bf16.mxu0 0
    %1725 = vmatmul.mubr.bf16.gmra.mrb[0].mxu0 %v1461
    %v1726 = vpop.f32.mrb[0].mxu0
    %v1727 = vadd.f32 %v1421, %v1726
    %v1728 = vpop.f32.mrb[0].mxu0
    %v1729 = vpop.f32.mrb[0].mxu0
    %v1730 = vadd.f32 %v1421, %v1729
    %v1731 = vpop.f32.mrb[0].mxu0
    %1732 = vmatprep.mubr.bf16.mxu0 0
    %1733 = vmatmul.mubr.bf16.gmra.mrb[0].mxu0 %v1464
    %v1734 = vpop.f32.mrb[0].mxu0
    %v1735 = vadd.f32 %v1421, %v1734
    %v1736 = vpop.f32.mrb[0].mxu0
    %v1737 = vpop.f32.mrb[0].mxu0
    %v1738 = vadd.f32 %v1421, %v1737
    %v1739 = vpop.f32.mrb[0].mxu0
    %1740 = vmatprep.mubr.bf16.mxu0 0
    %1741 = vmatmul.mubr.bf16.gmra.mrb[0].mxu0 %v1467
    %v1742 = vpop.f32.mrb[0].mxu0
    %v1743 = vadd.f32 %v1421, %v1742
    %v1744 = vpop.f32.mrb[0].mxu0
    %v1745 = vpop.f32.mrb[0].mxu0
    %v1746 = vadd.f32 %v1421, %v1745
    %v1747 = vpop.f32.mrb[0].mxu0
    %1748 = vmatprep.mubr.bf16.mxu0 0
    %1749 = vmatmul.mubr.bf16.gmra.mrb[0].mxu0 %v1470
    %v1750 = vpop.f32.mrb[0].mxu0
    %v1751 = vadd.f32 %v1421, %v1750
    %v1752 = vpop.f32.mrb[0].mxu0
    %v1753 = vpop.f32.mrb[0].mxu0
    %v1754 = vadd.f32 %v1421, %v1753
    %v1755 = vpop.f32.mrb[0].mxu0
    %1756 = vmatprep.mubr.bf16.mxu0 0
    %1757 = vmatmul.mubr.bf16.gmra.mrb[0].mxu0 %v1473
    %v1758 = vpop.f32.mrb[0].mxu0
    %v1759 = vadd.f32 %v1421, %v1758
    %v1760 = vpop.f32.mrb[0].mxu0
    %v1761 = vpop.f32.mrb[0].mxu0
    %v1762 = vadd.f32 %v1421, %v1761
    %v1763 = vpop.f32.mrb[0].mxu0
    %1764 = vmatprep.mubr.bf16.mxu0 0
    %1765 = vmatmul.mubr.bf16.gmra.mrb[0].mxu0 %v1476
    %v1766 = vpop.f32.mrb[0].mxu0
    %v1767 = vadd.f32 %v1421, %v1766
    %v1768 = vpop.f32.mrb[0].mxu0
    %v1769 = vpop.f32.mrb[0].mxu0
    %v1770 = vadd.f32 %v1421, %v1769
    %v1771 = vpop.f32.mrb[0].mxu0
    %1772 = vmatprep.mubr.bf16.mxu0 0
    %1773 = vmatmul.mubr.bf16.gmra.mrb[0].mxu0 %v1479
    %v1774 = vpop.f32.mrb[0].mxu0
    %v1775 = vadd.f32 %v1421, %v1774
    %v1776 = vpop.f32.mrb[0].mxu0
    %v1777 = vpop.f32.mrb[0].mxu0
    %v1778 = vadd.f32 %v1421, %v1777
    %v1779 = vpop.f32.mrb[0].mxu0
    %1780 = vmatprep.mubr.bf16.mxu0 0
    %1781 = vmatmul.mubr.bf16.gmra.mrb[0].mxu0 %v1482
    %v1782 = vpop.f32.mrb[0].mxu0
    %v1783 = vadd.f32 %v1421, %v1782
    %v1784 = vpop.f32.mrb[0].mxu0
    %v1785 = vpop.f32.mrb[0].mxu0
    %v1786 = vadd.f32 %v1421, %v1785
    %v1787 = vpop.f32.mrb[0].mxu0
    %1788 = vmatprep.mubr.bf16.mxu0 0
    %1789 = vmatmul.mubr.bf16.gmra.mrb[0].mxu0 %v1485
    %v1790 = vpop.f32.mrb[0].mxu0
    %v1791 = vadd.f32 %v1421, %v1790
    %v1792 = vpop.f32.mrb[0].mxu0
    %v1793 = vpop.f32.mrb[0].mxu0
    %v1794 = vadd.f32 %v1421, %v1793
    %v1795 = vpop.f32.mrb[0].mxu0
    %1796 = vmatprep.mubr.bf16.mxu0 0
    %1797 = vmatmul.mubr.bf16.gmra.mrb[0].mxu0 %v1488
    %v1798 = vpop.f32.mrb[0].mxu0
    %v1799 = vadd.f32 %v1421, %v1798
    %v1800 = vpop.f32.mrb[0].mxu0
    %v1801 = vpop.f32.mrb[0].mxu0
    %v1802 = vadd.f32 %v1421, %v1801
    %v1803 = vpop.f32.mrb[0].mxu0
    %1804 = vmatprep.mubr.bf16.mxu0 0
    %1805 = vmatmul.mubr.bf16.gmra.mrb[0].mxu0 %v1491
    %v1806 = vpop.f32.mrb[0].mxu0
    %v1807 = vadd.f32 %v1421, %v1806
    %v1808 = vpop.f32.mrb[0].mxu0
    %v1809 = vpop.f32.mrb[0].mxu0
    %v1810 = vadd.f32 %v1421, %v1809
    %v1811 = vpop.f32.mrb[0].mxu0
    %1812 = vmatprep.mubr.bf16.mxu0 0
    %1813 = vmatmul.mubr.bf16.gmra.mrb[0].mxu0 %v1494
    %v1814 = vpop.f32.mrb[0].mxu0
    %v1815 = vadd.f32 %v1421, %v1814
    %v1816 = vpop.f32.mrb[0].mxu0
    %v1817 = vpop.f32.mrb[0].mxu0
    %v1818 = vadd.f32 %v1421, %v1817
    %v1819 = vpop.f32.mrb[0].mxu0
    %1820 = vmatprep.mubr.bf16.mxu0 0
    %1821 = vmatmul.mubr.bf16.gmra.mrb[0].mxu0 %v1497
    %v1822 = vpop.f32.mrb[0].mxu0
    %v1823 = vadd.f32 %v1421, %v1822
    %v1824 = vpop.f32.mrb[0].mxu0
    %v1825 = vpop.f32.mrb[0].mxu0
    %v1826 = vadd.f32 %v1421, %v1825
    %v1827 = vpop.f32.mrb[0].mxu0
    %1828 = vmatprep.mubr.bf16.mxu0 0
    %1829 = vmatmul.mubr.bf16.gmra.mrb[0].mxu0 %v1500
    %v1830 = vpop.f32.mrb[0].mxu0
    %v1831 = vadd.f32 %v1421, %v1830
    %v1832 = vpop.f32.mrb[0].mxu0
    %v1833 = vpop.f32.mrb[0].mxu0
    %v1834 = vadd.f32 %v1421, %v1833
    %v1835 = vpop.f32.mrb[0].mxu0
    %1836 = vmatprep.mubr.bf16.mxu0 0
    %1837 = vmatmul.mubr.bf16.gmra.mrb[0].mxu0 %v1503
    %v1838 = vpop.f32.mrb[0].mxu0
    %v1839 = vadd.f32 %v1421, %v1838
    %v1840 = vpop.f32.mrb[0].mxu0
    %v1841 = vpop.f32.mrb[0].mxu0
    %v1842 = vadd.f32 %v1421, %v1841
    %v1843 = vpop.f32.mrb[0].mxu0
    %1844 = vmatprep.mubr.bf16.mxu0 0
    %1845 = vmatmul.mubr.bf16.gmra.mrb[0].mxu0 %v1506
    %v1846 = vpop.f32.mrb[0].mxu0
    %v1847 = vadd.f32 %v1421, %v1846
    %v1848 = vpop.f32.mrb[0].mxu0
    %v1849 = vpop.f32.mrb[0].mxu0
    %v1850 = vadd.f32 %v1421, %v1849
    %v1851 = vpop.f32.mrb[0].mxu0
    %1852 = vmatprep.mubr.bf16.mxu0 0
    %1853 = vmatmul.mubr.bf16.gmra.mrb[0].mxu0 %v1509
    %v1854 = vpop.f32.mrb[0].mxu0
    %v1855 = vadd.f32 %v1421, %v1854
    %v1856 = vpop.f32.mrb[0].mxu0
    %v1857 = vpop.f32.mrb[0].mxu0
    %v1858 = vadd.f32 %v1421, %v1857
    %v1859 = vpop.f32.mrb[0].mxu0
    %1860 = vmatprep.mubr.bf16.mxu0 0
    %1861 = vmatmul.mubr.bf16.gmra.mrb[0].mxu0 %v1512
    %v1862 = vpop.f32.mrb[0].mxu0
    %v1863 = vadd.f32 %v1421, %v1862
    %v1864 = vpop.f32.mrb[0].mxu0
    %v1865 = vpop.f32.mrb[0].mxu0
    %v1866 = vadd.f32 %v1421, %v1865
    %v1867 = vpop.f32.mrb[0].mxu0
    %1868 = vmatprep.mubr.bf16.mxu0 0
    %1869 = vmatmul.mubr.bf16.gmra.mrb[0].mxu0 %v1515
    %v1870 = vpop.f32.mrb[0].mxu0
    %v1871 = vadd.f32 %v1421, %v1870
    %v1872 = vpop.f32.mrb[0].mxu0
    %v1873 = vpop.f32.mrb[0].mxu0
    %v1874 = vadd.f32 %v1421, %v1873
    %v1875 = vpop.f32.mrb[0].mxu0
    %1876 = vmatprep.mubr.bf16.mxu0 0
    %1877 = vmatmul.mubr.bf16.gmra.mrb[0].mxu0 %v1518
    %v1878 = vpop.f32.mrb[0].mxu0
    %v1879 = vadd.f32 %v1421, %v1878
    %v1880 = vpop.f32.mrb[0].mxu0
    %v1881 = vpop.f32.mrb[0].mxu0
    %v1882 = vadd.f32 %v1421, %v1881
    %v1883 = vpop.f32.mrb[0].mxu0
    %1884 = vmatprep.mubr.bf16.mxu0 0
    %1885 = vmatmul.mubr.bf16.gmra.mrb[0].mxu0 %v1521
    %v1886 = vpop.f32.mrb[0].mxu0
    %v1887 = vadd.f32 %v1421, %v1886
    %v1888 = vpop.f32.mrb[0].mxu0
    %v1889 = vpop.f32.mrb[0].mxu0
    %v1890 = vadd.f32 %v1421, %v1889
    %v1891 = vpop.f32.mrb[0].mxu0
    %1892 = vmatprep.mubr.bf16.mxu0 0
    %1893 = vmatmul.mubr.bf16.gmra.mrb[0].mxu0 %v1524
    %v1894 = vpop.f32.mrb[0].mxu0
    %v1895 = vadd.f32 %v1421, %v1894
    %v1896 = vpop.f32.mrb[0].mxu0
    %v1897 = vpop.f32.mrb[0].mxu0
    %v1898 = vadd.f32 %v1421, %v1897
    %v1899 = vpop.f32.mrb[0].mxu0
    %1900 = vmatprep.mubr.bf16.mxu0 0
    %1901 = vmatmul.mubr.bf16.gmra.mrb[0].mxu0 %v1527
    %v1902 = vpop.f32.mrb[0].mxu0
    %v1903 = vadd.f32 %v1421, %v1902
    %v1904 = vpop.f32.mrb[0].mxu0
    %v1905 = vpop.f32.mrb[0].mxu0
    %v1906 = vadd.f32 %v1421, %v1905
    %v1907 = vpop.f32.mrb[0].mxu0
    %1908 = vmatprep.mubr.bf16.mxu0 0
    %1909 = vmatmul.mubr.bf16.gmra.mrb[0].mxu0 %v1530
    %v1910 = vpop.f32.mrb[0].mxu0
    %v1911 = vadd.f32 %v1421, %v1910
    %v1912 = vpop.f32.mrb[0].mxu0
    %v1913 = vpop.f32.mrb[0].mxu0
    %v1914 = vadd.f32 %v1421, %v1913
    %v1915 = vpop.f32.mrb[0].mxu0
    %1916 = vmatprep.mubr.bf16.mxu0 0
    %1917 = vmatmul.mubr.bf16.gmra.mrb[0].mxu0 %v1533
    %v1918 = vpop.f32.mrb[0].mxu0
    %v1919 = vadd.f32 %v1421, %v1918
    %v1920 = vpop.f32.mrb[0].mxu0
    %v1921 = vpop.f32.mrb[0].mxu0
    %v1922 = vadd.f32 %v1421, %v1921
    %v1923 = vpop.f32.mrb[0].mxu0
    %1924 = vmatprep.mubr.bf16.mxu0 0
    %1925 = vmatmul.mubr.bf16.gmra.mrb[0].mxu0 %v1536
    %v1926 = vpop.f32.mrb[0].mxu0
    %v1927 = vadd.f32 %v1421, %v1926
    %v1928 = vpop.f32.mrb[0].mxu0
    %v1929 = vpop.f32.mrb[0].mxu0
    %v1930 = vadd.f32 %v1421, %v1929
    %v1931 = vpop.f32.mrb[0].mxu0
    %1932 = vmatprep.mubr.bf16.mxu0 0
    %1933 = vmatmul.mubr.bf16.gmra.mrb[0].mxu0 %v1539
    %v1934 = vpop.f32.mrb[0].mxu0
    %v1935 = vadd.f32 %v1421, %v1934
    %v1936 = vpop.f32.mrb[0].mxu0
    %v1937 = vpop.f32.mrb[0].mxu0
    %v1938 = vadd.f32 %v1421, %v1937
    %v1939 = vpop.f32.mrb[0].mxu0
    %1940 = vmatprep.mubr.bf16.mxu0 0
    %1941 = vmatmul.mubr.bf16.gmra.mrb[0].mxu0 %v1542
    %v1942 = vpop.f32.mrb[0].mxu0
    %v1943 = vadd.f32 %v1421, %v1942
    %v1944 = vpop.f32.mrb[0].mxu0
    %v1945 = vpop.f32.mrb[0].mxu0
    %v1946 = vadd.f32 %v1421, %v1945
    %v1947 = vpop.f32.mrb[0].mxu0
    %1948 = vmatprep.mubr.bf16.mxu0 0
    %1949 = vmatmul.mubr.bf16.gmra.mrb[0].mxu0 %v1545
    %v1950 = vpop.f32.mrb[0].mxu0
    %v1951 = vadd.f32 %v1421, %v1950
    %v1952 = vpop.f32.mrb[0].mxu0
    %v1953 = vpop.f32.mrb[0].mxu0
    %v1954 = vadd.f32 %v1421, %v1953
    %v1955 = vpop.f32.mrb[0].mxu0
    %1956 = vmatprep.mubr.bf16.mxu0 0
    %1957 = vmatmul.mubr.bf16.gmra.mrb[0].mxu0 %v1548
    %v1958 = vpop.f32.mrb[0].mxu0
    %v1959 = vadd.f32 %v1421, %v1958
    %v1960 = vpop.f32.mrb[0].mxu0
    %v1961 = vpop.f32.mrb[0].mxu0
    %v1962 = vadd.f32 %v1421, %v1961
    %v1963 = vpop.f32.mrb[0].mxu0
    %1964 = vmatprep.mubr.bf16.mxu0 0
    %1965 = vmatmul.mubr.bf16.gmra.mrb[0].mxu0 %v1551
    %v1966 = vpop.f32.mrb[0].mxu0
    %v1967 = vadd.f32 %v1421, %v1966
    %v1968 = vpop.f32.mrb[0].mxu0
    %v1969 = vpop.f32.mrb[0].mxu0
    %v1970 = vadd.f32 %v1421, %v1969
    %v1971 = vpop.f32.mrb[0].mxu0
    %1972 = vmatprep.mubr.bf16.mxu0 0
    %1973 = vmatmul.mubr.bf16.gmra.mrb[0].mxu0 %v1554
    %v1974 = vpop.f32.mrb[0].mxu0
    %v1975 = vadd.f32 %v1421, %v1974
    %v1976 = vpop.f32.mrb[0].mxu0
    %v1977 = vpop.f32.mrb[0].mxu0
    %v1978 = vadd.f32 %v1421, %v1977
    %v1979 = vpop.f32.mrb[0].mxu0
    %1980 = vmatprep.mubr.bf16.mxu0 0
    %1981 = vmatmul.mubr.bf16.gmra.mrb[0].mxu0 %v1557
    %v1982 = vpop.f32.mrb[0].mxu0
    %v1983 = vadd.f32 %v1421, %v1982
    %v1984 = vpop.f32.mrb[0].mxu0
    %v1985 = vpop.f32.mrb[0].mxu0
    %v1986 = vadd.f32 %v1421, %v1985
    %v1987 = vpop.f32.mrb[0].mxu0
    %1988 = vmatprep.mubr.bf16.mxu0 0
    %1989 = vmatmul.mubr.bf16.gmra.mrb[0].mxu0 %v1560
    %v1990 = vpop.f32.mrb[0].mxu0
    %v1991 = vadd.f32 %v1421, %v1990
    %v1992 = vpop.f32.mrb[0].mxu0
    %v1993 = vpop.f32.mrb[0].mxu0
    %v1994 = vadd.f32 %v1421, %v1993
    %v1995 = vpop.f32.mrb[0].mxu0
    %1996 = vmatprep.mubr.bf16.mxu0 0
    %1997 = vmatmul.mubr.bf16.gmra.mrb[0].mxu0 %v1563
    %v1998 = vpop.f32.mrb[0].mxu0
    %v1999 = vadd.f32 %v1421, %v1998
    %v2000 = vpop.f32.mrb[0].mxu0
    %v2001 = vpop.f32.mrb[0].mxu0
    %v2002 = vadd.f32 %v1421, %v2001
    %v2003 = vpop.f32.mrb[0].mxu0
    %2004 = vmatprep.mubr.bf16.mxu0 0
    %2005 = vmatmul.mubr.bf16.gmra.mrb[0].mxu0 %v1566
    %v2006 = vpop.f32.mrb[0].mxu0
    %v2007 = vadd.f32 %v1421, %v2006
    %v2008 = vpop.f32.mrb[0].mxu0
    %v2009 = vpop.f32.mrb[0].mxu0
    %v2010 = vadd.f32 %v1421, %v2009
    %v2011 = vpop.f32.mrb[0].mxu0
    %2012 = vmatprep.mubr.bf16.mxu0 0
    %2013 = vmatmul.mubr.bf16.gmra.mrb[0].mxu0 %v1569
    %v2014 = vpop.f32.mrb[0].mxu0
    %v2015 = vadd.f32 %v1421, %v2014
    %v2016 = vpop.f32.mrb[0].mxu0
    %v2017 = vpop.f32.mrb[0].mxu0
    %v2018 = vadd.f32 %v1421, %v2017
    %v2019 = vpop.f32.mrb[0].mxu0
    %2020 = vmatprep.mubr.bf16.mxu0 0
    %2021 = vmatmul.mubr.bf16.gmra.mrb[0].mxu0 %v1572
    %v2022 = vpop.f32.mrb[0].mxu0
    %v2023 = vadd.f32 %v1421, %v2022
    %v2024 = vpop.f32.mrb[0].mxu0
    %v2025 = vpop.f32.mrb[0].mxu0
    %v2026 = vadd.f32 %v1421, %v2025
    %v2027 = vpop.f32.mrb[0].mxu0
    %2028 = vmatprep.mubr.bf16.mxu0 0
    %2029 = vmatmul.mubr.bf16.gmra.mrb[0].mxu0 %v1575
    %v2030 = vpop.f32.mrb[0].mxu0
    %v2031 = vadd.f32 %v1421, %v2030
    %v2032 = vpop.f32.mrb[0].mxu0
    %v2033 = vpop.f32.mrb[0].mxu0
    %v2034 = vadd.f32 %v1421, %v2033
    %v2035 = vpop.f32.mrb[0].mxu0
    %2036 = vmatprep.mubr.bf16.mxu0 0
    %2037 = vmatmul.mubr.bf16.gmra.mrb[0].mxu0 %v1578
    %v2038 = vpop.f32.mrb[0].mxu0
    %v2039 = vadd.f32 %v1421, %v2038
    %v2040 = vpop.f32.mrb[0].mxu0
    %v2041 = vpop.f32.mrb[0].mxu0
    %v2042 = vadd.f32 %v1421, %v2041
    %v2043 = vpop.f32.mrb[0].mxu0
    %2044 = vmatprep.mubr.bf16.mxu0 0
    %2045 = vmatmul.mubr.bf16.gmra.mrb[0].mxu0 %v1581
    %v2046 = vpop.f32.mrb[0].mxu0
    %v2047 = vadd.f32 %v1421, %v2046
    %v2048 = vpop.f32.mrb[0].mxu0
    %v2049 = vpop.f32.mrb[0].mxu0
    %v2050 = vadd.f32 %v1421, %v2049
    %v2051 = vpop.f32.mrb[0].mxu0
    %2052 = vmatprep.mubr.bf16.mxu0 0
    %2053 = vmatmul.mubr.bf16.gmra.mrb[0].mxu0 %v1584
    %v2054 = vpop.f32.mrb[0].mxu0
    %v2055 = vadd.f32 %v1421, %v2054
    %v2056 = vpop.f32.mrb[0].mxu0
    %v2057 = vpop.f32.mrb[0].mxu0
    %v2058 = vadd.f32 %v1421, %v2057
    %v2059 = vpop.f32.mrb[0].mxu0
    %2060 = vmatprep.mubr.bf16.mxu0 0
    %2061 = vmatmul.mubr.bf16.gmra.mrb[0].mxu0 %v1587
    %v2062 = vpop.f32.mrb[0].mxu0
    %v2063 = vadd.f32 %v1421, %v2062
    %v2064 = vpop.f32.mrb[0].mxu0
    %v2065 = vpop.f32.mrb[0].mxu0
    %v2066 = vadd.f32 %v1421, %v2065
    %v2067 = vpop.f32.mrb[0].mxu0
    %2068 = vmatprep.mubr.bf16.mxu0 0
    %2069 = vmatmul.mubr.bf16.gmra.mrb[0].mxu0 %v1590
    %v2070 = vpop.f32.mrb[0].mxu0
    %v2071 = vadd.f32 %v1421, %v2070
    %v2072 = vpop.f32.mrb[0].mxu0
    %v2073 = vpop.f32.mrb[0].mxu0
    %v2074 = vadd.f32 %v1421, %v2073
    %v2075 = vpop.f32.mrb[0].mxu0
    %2076 = vmatprep.mubr.bf16.mxu0 0
    %2077 = vmatmul.mubr.bf16.gmra.mrb[0].mxu0 %v1593
    %v2078 = vpop.f32.mrb[0].mxu0
    %v2079 = vadd.f32 %v1421, %v2078
    %v2080 = vpop.f32.mrb[0].mxu0
    %v2081 = vpop.f32.mrb[0].mxu0
    %v2082 = vadd.f32 %v1421, %v2081
    %v2083 = vpop.f32.mrb[0].mxu0
    %2084 = vmatprep.mubr.bf16.mxu0 0
    %2085 = vmatmul.mubr.bf16.gmra.mrb[0].mxu0 %v1596
    %v2086 = vpop.f32.mrb[0].mxu0
    %v2087 = vadd.f32 %v1421, %v2086
    %v2088 = vpop.f32.mrb[0].mxu0
    %v2089 = vpop.f32.mrb[0].mxu0
    %v2090 = vadd.f32 %v1421, %v2089
    %v2091 = vpop.f32.mrb[0].mxu0
    %2092 = vmatprep.mubr.bf16.mxu0 0
    %2093 = vmatmul.mubr.bf16.gmra.mrb[0].mxu0 %v1599
    %v2094 = vpop.f32.mrb[0].mxu0
    %v2095 = vadd.f32 %v1421, %v2094
    %v2096 = vpop.f32.mrb[0].mxu0
    %v2097 = vpop.f32.mrb[0].mxu0
    %v2098 = vadd.f32 %v1421, %v2097
    %v2099 = vpop.f32.mrb[0].mxu0
    %2100 = vmatprep.mubr.bf16.mxu0 0
    %2101 = vmatmul.mubr.bf16.gmra.mrb[0].mxu0 %v1602
    %v2102 = vpop.f32.mrb[0].mxu0
    %v2103 = vadd.f32 %v1421, %v2102
    %v2104 = vpop.f32.mrb[0].mxu0
    %v2105 = vpop.f32.mrb[0].mxu0
    %v2106 = vadd.f32 %v1421, %v2105
    %v2107 = vpop.f32.mrb[0].mxu0
    %2108 = vmatprep.mubr.bf16.mxu0 0
    %2109 = vmatmul.mubr.bf16.gmra.mrb[0].mxu0 %v1605
    %v2110 = vpop.f32.mrb[0].mxu0
    %v2111 = vadd.f32 %v1421, %v2110
    %v2112 = vpop.f32.mrb[0].mxu0
    %v2113 = vpop.f32.mrb[0].mxu0
    %v2114 = vadd.f32 %v1421, %v2113
    %v2115 = vpop.f32.mrb[0].mxu0
    %2116 = vmatprep.mubr.bf16.mxu0 0
    %2117 = vmatmul.mubr.bf16.gmra.mrb[0].mxu0 %v1608
    %v2118 = vpop.f32.mrb[0].mxu0
    %v2119 = vadd.f32 %v1421, %v2118
    %v2120 = vpop.f32.mrb[0].mxu0
    %v2121 = vpop.f32.mrb[0].mxu0
    %v2122 = vadd.f32 %v1421, %v2121
    %v2123 = vpop.f32.mrb[0].mxu0
    %2124 = vmatprep.mubr.bf16.mxu0 0
    %2125 = vmatmul.mubr.bf16.gmra.mrb[0].mxu0 %v1611
    %v2126 = vpop.f32.mrb[0].mxu0
    %v2127 = vadd.f32 %v1421, %v2126
    %v2128 = vpop.f32.mrb[0].mxu0
    %v2129 = vpop.f32.mrb[0].mxu0
    %v2130 = vadd.f32 %v1421, %v2129
    %v2131 = vpop.f32.mrb[0].mxu0
    %2132 = vmatprep.mubr.bf16.mxu0 0
    %2133 = vmatmul.mubr.bf16.gmra.mrb[0].mxu0 %v1614
    %v2134 = vpop.f32.mrb[0].mxu0
    %v2135 = vadd.f32 %v1421, %v2134
    %v2136 = vpop.f32.mrb[0].mxu0
    %v2137 = vpop.f32.mrb[0].mxu0
    %v2138 = vadd.f32 %v1421, %v2137
    %v2139 = vpop.f32.mrb[0].mxu0
    %2140 = vmatprep.mubr.bf16.mxu0 0
    %2141 = vmatmul.mubr.bf16.gmra.mrb[0].mxu0 %v1617
    %v2142 = vpop.f32.mrb[0].mxu0
    %v2143 = vadd.f32 %v1421, %v2142
    %v2144 = vpop.f32.mrb[0].mxu0
    %v2145 = vpop.f32.mrb[0].mxu0
    %v2146 = vadd.f32 %v1421, %v2145
    %v2147 = vpop.f32.mrb[0].mxu0
    %2148 = vmatprep.mubr.bf16.mxu0 0
    %2149 = vmatmul.mubr.bf16.gmra.mrb[0].mxu0 %v1620
    %v2150 = vpop.f32.mrb[0].mxu0
    %v2151 = vadd.f32 %v1421, %v2150
    %v2152 = vpop.f32.mrb[0].mxu0
    %v2153 = vpop.f32.mrb[0].mxu0
    %v2154 = vadd.f32 %v1421, %v2153
    %v2155 = vpop.f32.mrb[0].mxu0
    %2156 = vmatprep.mubr.bf16.mxu0 0
    %2157 = vmatmul.mubr.bf16.gmra.mrb[0].mxu0 %v1623
    %v2158 = vpop.f32.mrb[0].mxu0
    %v2159 = vadd.f32 %v1421, %v2158
    %v2160 = vpop.f32.mrb[0].mxu0
    %v2161 = vpop.f32.mrb[0].mxu0
    %v2162 = vadd.f32 %v1421, %v2161
    %v2163 = vpop.f32.mrb[0].mxu0
    %2164 = vmatprep.mubr.bf16.mxu0 0
    %2165 = vmatmul.mubr.bf16.gmra.mrb[0].mxu0 %v1626
    %v2166 = vpop.f32.mrb[0].mxu0
    %v2167 = vadd.f32 %v1421, %v2166
    %v2168 = vpop.f32.mrb[0].mxu0
    %v2169 = vpop.f32.mrb[0].mxu0
    %v2170 = vadd.f32 %v1421, %v2169
    %v2171 = vpop.f32.mrb[0].mxu0
    %2172 = vdwg.mxu0
    %v2173 = vpack.c.bf16 %v1666, %v1663
    %v2174 = vpack.c.bf16 %v1674, %v1671
    %v2175 = vpack.c.bf16 %v1682, %v1679
    %v2176 = vpack.c.bf16 %v1690, %v1687
    %v2177 = vpack.c.bf16 %v1698, %v1695
    %v2178 = vpack.c.bf16 %v1706, %v1703
    %v2179 = vpack.c.bf16 %v1714, %v1711
    %v2180 = vpack.c.bf16 %v1722, %v1719
    %v2181 = vpack.c.bf16 %v1730, %v1727
    %v2182 = vpack.c.bf16 %v1738, %v1735
    %v2183 = vpack.c.bf16 %v1746, %v1743
    %v2184 = vpack.c.bf16 %v1754, %v1751
    %v2185 = vpack.c.bf16 %v1762, %v1759
    %v2186 = vpack.c.bf16 %v1770, %v1767
    %v2187 = vpack.c.bf16 %v1778, %v1775
    %v2188 = vpack.c.bf16 %v1786, %v1783
    %v2189 = vpack.c.bf16 %v1794, %v1791
    %v2190 = vpack.c.bf16 %v1802, %v1799
    %v2191 = vpack.c.bf16 %v1810, %v1807
    %v2192 = vpack.c.bf16 %v1818, %v1815
    %v2193 = vpack.c.bf16 %v1826, %v1823
    %v2194 = vpack.c.bf16 %v1834, %v1831
    %v2195 = vpack.c.bf16 %v1842, %v1839
    %v2196 = vpack.c.bf16 %v1850, %v1847
    %v2197 = vpack.c.bf16 %v1858, %v1855
    %v2198 = vpack.c.bf16 %v1866, %v1863
    %v2199 = vpack.c.bf16 %v1874, %v1871
    %v2200 = vpack.c.bf16 %v1882, %v1879
    %v2201 = vpack.c.bf16 %v1890, %v1887
    %v2202 = vpack.c.bf16 %v1898, %v1895
    %v2203 = vpack.c.bf16 %v1906, %v1903
    %v2204 = vpack.c.bf16 %v1914, %v1911
    %v2205 = vpack.c.bf16 %v1922, %v1919
    %v2206 = vpack.c.bf16 %v1930, %v1927
    %v2207 = vpack.c.bf16 %v1938, %v1935
    %v2208 = vpack.c.bf16 %v1946, %v1943
    %v2209 = vpack.c.bf16 %v1954, %v1951
    %v2210 = vpack.c.bf16 %v1962, %v1959
    %v2211 = vpack.c.bf16 %v1970, %v1967
    %v2212 = vpack.c.bf16 %v1978, %v1975
    %v2213 = vpack.c.bf16 %v1986, %v1983
    %v2214 = vpack.c.bf16 %v1994, %v1991
    %v2215 = vpack.c.bf16 %v2002, %v1999
    %v2216 = vpack.c.bf16 %v2010, %v2007
    %v2217 = vpack.c.bf16 %v2018, %v2015
    %v2218 = vpack.c.bf16 %v2026, %v2023
    %v2219 = vpack.c.bf16 %v2034, %v2031
    %v2220 = vpack.c.bf16 %v2042, %v2039
    %v2221 = vpack.c.bf16 %v2050, %v2047
    %v2222 = vpack.c.bf16 %v2058, %v2055
    %v2223 = vpack.c.bf16 %v2066, %v2063
    %v2224 = vpack.c.bf16 %v2074, %v2071
    %v2225 = vpack.c.bf16 %v2082, %v2079
    %v2226 = vpack.c.bf16 %v2090, %v2087
    %v2227 = vpack.c.bf16 %v2098, %v2095
    %v2228 = vpack.c.bf16 %v2106, %v2103
    %v2229 = vpack.c.bf16 %v2114, %v2111
    %v2230 = vpack.c.bf16 %v2122, %v2119
    %v2231 = vpack.c.bf16 %v2130, %v2127
    %v2232 = vpack.c.bf16 %v2138, %v2135
    %v2233 = vpack.c.bf16 %v2146, %v2143
    %v2234 = vpack.c.bf16 %v2154, %v2151
    %v2235 = vpack.c.bf16 %v2162, %v2159
    %v2236 = vpack.c.bf16 %v2170, %v2167
    %v2301 = vunpack.c.l.b16 %v2173
    %v2302 = vunpack.c.h.b16 %v2173
    %v2303 = vunpack.c.l.b16 %v2174
    %v2304 = vunpack.c.h.b16 %v2174
    %v2305 = vunpack.c.l.b16 %v2175
    %v2306 = vunpack.c.h.b16 %v2175
    %v2307 = vunpack.c.l.b16 %v2176
    %v2308 = vunpack.c.h.b16 %v2176
    %v2309 = vunpack.c.l.b16 %v2177
    %v2310 = vunpack.c.h.b16 %v2177
    %v2311 = vunpack.c.l.b16 %v2178
    %v2312 = vunpack.c.h.b16 %v2178
    %v2313 = vunpack.c.l.b16 %v2179
    %v2314 = vunpack.c.h.b16 %v2179
    %v2315 = vunpack.c.l.b16 %v2180
    %v2316 = vunpack.c.h.b16 %v2180
    %v2317 = vunpack.c.l.b16 %v2181
    %v2318 = vunpack.c.h.b16 %v2181
    %v2319 = vunpack.c.l.b16 %v2182
    %v2320 = vunpack.c.h.b16 %v2182
    %v2321 = vunpack.c.l.b16 %v2183
    %v2322 = vunpack.c.h.b16 %v2183
    %v2323 = vunpack.c.l.b16 %v2184
    %v2324 = vunpack.c.h.b16 %v2184
    %v2325 = vunpack.c.l.b16 %v2185
    %v2326 = vunpack.c.h.b16 %v2185
    %v2327 = vunpack.c.l.b16 %v2186
    %v2328 = vunpack.c.h.b16 %v2186
    %v2329 = vunpack.c.l.b16 %v2187
    %v2330 = vunpack.c.h.b16 %v2187
    %v2331 = vunpack.c.l.b16 %v2188
    %v2332 = vunpack.c.h.b16 %v2188
    %v2333 = vunpack.c.l.b16 %v2189
    %v2334 = vunpack.c.h.b16 %v2189
    %v2335 = vunpack.c.l.b16 %v2190
    %v2336 = vunpack.c.h.b16 %v2190
    %v2337 = vunpack.c.l.b16 %v2191
    %v2338 = vunpack.c.h.b16 %v2191
    %v2339 = vunpack.c.l.b16 %v2192
    %v2340 = vunpack.c.h.b16 %v2192
    %v2341 = vunpack.c.l.b16 %v2193
    %v2342 = vunpack.c.h.b16 %v2193
    %v2343 = vunpack.c.l.b16 %v2194
    %v2344 = vunpack.c.h.b16 %v2194
    %v2345 = vunpack.c.l.b16 %v2195
    %v2346 = vunpack.c.h.b16 %v2195
    %v2347 = vunpack.c.l.b16 %v2196
    %v2348 = vunpack.c.h.b16 %v2196
    %v2349 = vunpack.c.l.b16 %v2197
    %v2350 = vunpack.c.h.b16 %v2197
    %v2351 = vunpack.c.l.b16 %v2198
    %v2352 = vunpack.c.h.b16 %v2198
    %v2353 = vunpack.c.l.b16 %v2199
    %v2354 = vunpack.c.h.b16 %v2199
    %v2355 = vunpack.c.l.b16 %v2200
    %v2356 = vunpack.c.h.b16 %v2200
    %v2357 = vunpack.c.l.b16 %v2201
    %v2358 = vunpack.c.h.b16 %v2201
    %v2359 = vunpack.c.l.b16 %v2202
    %v2360 = vunpack.c.h.b16 %v2202
    %v2361 = vunpack.c.l.b16 %v2203
    %v2362 = vunpack.c.h.b16 %v2203
    %v2363 = vunpack.c.l.b16 %v2204
    %v2364 = vunpack.c.h.b16 %v2204
    %v2365 = vunpack.c.l.b16 %v2205
    %v2366 = vunpack.c.h.b16 %v2205
    %v2367 = vunpack.c.l.b16 %v2206
    %v2368 = vunpack.c.h.b16 %v2206
    %v2369 = vunpack.c.l.b16 %v2207
    %v2370 = vunpack.c.h.b16 %v2207
    %v2371 = vunpack.c.l.b16 %v2208
    %v2372 = vunpack.c.h.b16 %v2208
    %v2373 = vunpack.c.l.b16 %v2209
    %v2374 = vunpack.c.h.b16 %v2209
    %v2375 = vunpack.c.l.b16 %v2210
    %v2376 = vunpack.c.h.b16 %v2210
    %v2377 = vunpack.c.l.b16 %v2211
    %v2378 = vunpack.c.h.b16 %v2211
    %v2379 = vunpack.c.l.b16 %v2212
    %v2380 = vunpack.c.h.b16 %v2212
    %v2381 = vunpack.c.l.b16 %v2213
    %v2382 = vunpack.c.h.b16 %v2213
    %v2383 = vunpack.c.l.b16 %v2214
    %v2384 = vunpack.c.h.b16 %v2214
    %v2385 = vunpack.c.l.b16 %v2215
    %v2386 = vunpack.c.h.b16 %v2215
    %v2387 = vunpack.c.l.b16 %v2216
    %v2388 = vunpack.c.h.b16 %v2216
    %v2389 = vunpack.c.l.b16 %v2217
    %v2390 = vunpack.c.h.b16 %v2217
    %v2391 = vunpack.c.l.b16 %v2218
    %v2392 = vunpack.c.h.b16 %v2218
    %v2393 = vunpack.c.l.b16 %v2219
    %v2394 = vunpack.c.h.b16 %v2219
    %v2395 = vunpack.c.l.b16 %v2220
    %v2396 = vunpack.c.h.b16 %v2220
    %v2397 = vunpack.c.l.b16 %v2221
    %v2398 = vunpack.c.h.b16 %v2221
    %v2399 = vunpack.c.l.b16 %v2222
    %v2400 = vunpack.c.h.b16 %v2222
    %v2401 = vunpack.c.l.b16 %v2223
    %v2402 = vunpack.c.h.b16 %v2223
    %v2403 = vunpack.c.l.b16 %v2224
    %v2404 = vunpack.c.h.b16 %v2224
    %v2405 = vunpack.c.l.b16 %v2225
    %v2406 = vunpack.c.h.b16 %v2225
    %v2407 = vunpack.c.l.b16 %v2226
    %v2408 = vunpack.c.h.b16 %v2226
    %v2409 = vunpack.c.l.b16 %v2227
    %v2410 = vunpack.c.h.b16 %v2227
    %v2411 = vunpack.c.l.b16 %v2228
    %v2412 = vunpack.c.h.b16 %v2228
    %v2413 = vunpack.c.l.b16 %v2229
    %v2414 = vunpack.c.h.b16 %v2229
    %v2415 = vunpack.c.l.b16 %v2230
    %v2416 = vunpack.c.h.b16 %v2230
    %v2417 = vunpack.c.l.b16 %v2231
    %v2418 = vunpack.c.h.b16 %v2231
    %v2419 = vunpack.c.l.b16 %v2232
    %v2420 = vunpack.c.h.b16 %v2232
    %v2421 = vunpack.c.l.b16 %v2233
    %v2422 = vunpack.c.h.b16 %v2233
    %v2423 = vunpack.c.l.b16 %v2234
    %v2424 = vunpack.c.h.b16 %v2234
    %v2425 = vunpack.c.l.b16 %v2235
    %v2426 = vunpack.c.h.b16 %v2235
    %v2427 = vunpack.c.l.b16 %v2236
    %v2428 = vunpack.c.h.b16 %v2236
    %v2429 = vpack.c.b16 %v2301, %v2301
    %v2430 = vpack.c.b16 %v2302, %v2302
    %v2431 = vpack.c.b16 %v2303, %v2303
    %v2432 = vpack.c.b16 %v2304, %v2304
    %v2433 = vpack.c.b16 %v2305, %v2305
    %v2434 = vpack.c.b16 %v2306, %v2306
    %v2435 = vpack.c.b16 %v2307, %v2307
    %v2436 = vpack.c.b16 %v2308, %v2308
    %v2437 = vpack.c.b16 %v2309, %v2309
    %v2438 = vpack.c.b16 %v2310, %v2310
    %v2439 = vpack.c.b16 %v2311, %v2311
    %v2440 = vpack.c.b16 %v2312, %v2312
    %v2441 = vpack.c.b16 %v2313, %v2313
    %v2442 = vpack.c.b16 %v2314, %v2314
    %v2443 = vpack.c.b16 %v2315, %v2315
    %v2444 = vpack.c.b16 %v2316, %v2316
    %v2445 = vpack.c.b16 %v2317, %v2317
    %v2446 = vpack.c.b16 %v2318, %v2318
    %v2447 = vpack.c.b16 %v2319, %v2319
    %v2448 = vpack.c.b16 %v2320, %v2320
    %v2449 = vpack.c.b16 %v2321, %v2321
    %v2450 = vpack.c.b16 %v2322, %v2322
    %v2451 = vpack.c.b16 %v2323, %v2323
    %v2452 = vpack.c.b16 %v2324, %v2324
    %v2453 = vpack.c.b16 %v2325, %v2325
    %v2454 = vpack.c.b16 %v2326, %v2326
    %v2455 = vpack.c.b16 %v2327, %v2327
    %v2456 = vpack.c.b16 %v2328, %v2328
    %v2457 = vpack.c.b16 %v2329, %v2329
    %v2458 = vpack.c.b16 %v2330, %v2330
    %v2459 = vpack.c.b16 %v2331, %v2331
    %v2460 = vpack.c.b16 %v2332, %v2332
    %v2461 = vpack.c.b16 %v2333, %v2333
    %v2462 = vpack.c.b16 %v2334, %v2334
    %v2463 = vpack.c.b16 %v2335, %v2335
    %v2464 = vpack.c.b16 %v2336, %v2336
    %v2465 = vpack.c.b16 %v2337, %v2337
    %v2466 = vpack.c.b16 %v2338, %v2338
    %v2467 = vpack.c.b16 %v2339, %v2339
    %v2468 = vpack.c.b16 %v2340, %v2340
    %v2469 = vpack.c.b16 %v2341, %v2341
    %v2470 = vpack.c.b16 %v2342, %v2342
    %v2471 = vpack.c.b16 %v2343, %v2343
    %v2472 = vpack.c.b16 %v2344, %v2344
    %v2473 = vpack.c.b16 %v2345, %v2345
    %v2474 = vpack.c.b16 %v2346, %v2346
    %v2475 = vpack.c.b16 %v2347, %v2347
    %v2476 = vpack.c.b16 %v2348, %v2348
    %v2477 = vpack.c.b16 %v2349, %v2349
    %v2478 = vpack.c.b16 %v2350, %v2350
    %v2479 = vpack.c.b16 %v2351, %v2351
    %v2480 = vpack.c.b16 %v2352, %v2352
    %v2481 = vpack.c.b16 %v2353, %v2353
    %v2482 = vpack.c.b16 %v2354, %v2354
    %v2483 = vpack.c.b16 %v2355, %v2355
    %v2484 = vpack.c.b16 %v2356, %v2356
    %v2485 = vpack.c.b16 %v2357, %v2357
    %v2486 = vpack.c.b16 %v2358, %v2358
    %v2487 = vpack.c.b16 %v2359, %v2359
    %v2488 = vpack.c.b16 %v2360, %v2360
    %v2489 = vpack.c.b16 %v2361, %v2361
    %v2490 = vpack.c.b16 %v2362, %v2362
    %v2491 = vpack.c.b16 %v2363, %v2363
    %v2492 = vpack.c.b16 %v2364, %v2364
    %v2493 = vpack.c.b16 %v2365, %v2365
    %v2494 = vpack.c.b16 %v2366, %v2366
    %v2495 = vpack.c.b16 %v2367, %v2367
    %v2496 = vpack.c.b16 %v2368, %v2368
    %v2497 = vpack.c.b16 %v2369, %v2369
    %v2498 = vpack.c.b16 %v2370, %v2370
    %v2499 = vpack.c.b16 %v2371, %v2371
    %v2500 = vpack.c.b16 %v2372, %v2372
    %v2501 = vpack.c.b16 %v2373, %v2373
    %v2502 = vpack.c.b16 %v2374, %v2374
    %v2503 = vpack.c.b16 %v2375, %v2375
    %v2504 = vpack.c.b16 %v2376, %v2376
    %v2505 = vpack.c.b16 %v2377, %v2377
    %v2506 = vpack.c.b16 %v2378, %v2378
    %v2507 = vpack.c.b16 %v2379, %v2379
    %v2508 = vpack.c.b16 %v2380, %v2380
    %v2509 = vpack.c.b16 %v2381, %v2381
    %v2510 = vpack.c.b16 %v2382, %v2382
    %v2511 = vpack.c.b16 %v2383, %v2383
    %v2512 = vpack.c.b16 %v2384, %v2384
    %v2513 = vpack.c.b16 %v2385, %v2385
    %v2514 = vpack.c.b16 %v2386, %v2386
    %v2515 = vpack.c.b16 %v2387, %v2387
    %v2516 = vpack.c.b16 %v2388, %v2388
    %v2517 = vpack.c.b16 %v2389, %v2389
    %v2518 = vpack.c.b16 %v2390, %v2390
    %v2519 = vpack.c.b16 %v2391, %v2391
    %v2520 = vpack.c.b16 %v2392, %v2392
    %v2521 = vpack.c.b16 %v2393, %v2393
    %v2522 = vpack.c.b16 %v2394, %v2394
    %v2523 = vpack.c.b16 %v2395, %v2395
    %v2524 = vpack.c.b16 %v2396, %v2396
    %v2525 = vpack.c.b16 %v2397, %v2397
    %v2526 = vpack.c.b16 %v2398, %v2398
    %v2527 = vpack.c.b16 %v2399, %v2399
    %v2528 = vpack.c.b16 %v2400, %v2400
    %v2529 = vpack.c.b16 %v2401, %v2401
    %v2530 = vpack.c.b16 %v2402, %v2402
    %v2531 = vpack.c.b16 %v2403, %v2403
    %v2532 = vpack.c.b16 %v2404, %v2404
    %v2533 = vpack.c.b16 %v2405, %v2405
    %v2534 = vpack.c.b16 %v2406, %v2406
    %v2535 = vpack.c.b16 %v2407, %v2407
    %v2536 = vpack.c.b16 %v2408, %v2408
    %v2537 = vpack.c.b16 %v2409, %v2409
    %v2538 = vpack.c.b16 %v2410, %v2410
    %v2539 = vpack.c.b16 %v2411, %v2411
    %v2540 = vpack.c.b16 %v2412, %v2412
    %v2541 = vpack.c.b16 %v2413, %v2413
    %v2542 = vpack.c.b16 %v2414, %v2414
    %v2543 = vpack.c.b16 %v2415, %v2415
    %v2544 = vpack.c.b16 %v2416, %v2416
    %v2545 = vpack.c.b16 %v2417, %v2417
    %v2546 = vpack.c.b16 %v2418, %v2418
    %v2547 = vpack.c.b16 %v2419, %v2419
    %v2548 = vpack.c.b16 %v2420, %v2420
    %v2549 = vpack.c.b16 %v2421, %v2421
    %v2550 = vpack.c.b16 %v2422, %v2422
    %v2551 = vpack.c.b16 %v2423, %v2423
    %v2552 = vpack.c.b16 %v2424, %v2424
    %v2553 = vpack.c.b16 %v2425, %v2425
    %v2554 = vpack.c.b16 %v2426, %v2426
    %v2555 = vpack.c.b16 %v2427, %v2427
    %v2556 = vpack.c.b16 %v2428, %v2428
    %2685 = vst [vmem:[#allocation2] sm:$0xf] %v2429
    %2686 = vst [vmem:[#allocation2 + $0x4] sm:$0xf] %v2430
    %2687 = vst [vmem:[#allocation2 + $0x8] sm:$0xf] %v2431
    %2688 = vst [vmem:[#allocation2 + $0xc] sm:$0xf] %v2432
    %2689 = vst [vmem:[#allocation2 + $0x10] sm:$0xf] %v2433
    %2690 = vst [vmem:[#allocation2 + $0x14] sm:$0xf] %v2434
    %2691 = vst [vmem:[#allocation2 + $0x18] sm:$0xf] %v2435
    %2692 = vst [vmem:[#allocation2 + $0x1c] sm:$0xf] %v2436
    %2693 = vst [vmem:[#allocation2 + $0x20] sm:$0xf] %v2437
    %2694 = vst [vmem:[#allocation2 + $0x24] sm:$0xf] %v2438
    %2695 = vst [vmem:[#allocation2 + $0x28] sm:$0xf] %v2439
    %2696 = vst [vmem:[#allocation2 + $0x2c] sm:$0xf] %v2440
    %2697 = vst [vmem:[#allocation2 + $0x30] sm:$0xf] %v2441
    %2698 = vst [vmem:[#allocation2 + $0x34] sm:$0xf] %v2442
    %2699 = vst [vmem:[#allocation2 + $0x38] sm:$0xf] %v2443
    %2700 = vst [vmem:[#allocation2 + $0x3c] sm:$0xf] %v2444
    %2701 = vst [vmem:[#allocation2 + $0x40] sm:$0xf] %v2445
    %2702 = vst [vmem:[#allocation2 + $0x44] sm:$0xf] %v2446
    %2703 = vst [vmem:[#allocation2 + $0x48] sm:$0xf] %v2447
    %2704 = vst [vmem:[#allocation2 + $0x4c] sm:$0xf] %v2448
    %2705 = vst [vmem:[#allocation2 + $0x50] sm:$0xf] %v2449
    %2706 = vst [vmem:[#allocation2 + $0x54] sm:$0xf] %v2450
    %2707 = vst [vmem:[#allocation2 + $0x58] sm:$0xf] %v2451
    %2708 = vst [vmem:[#allocation2 + $0x5c] sm:$0xf] %v2452
    %2709 = vst [vmem:[#allocation2 + $0x60] sm:$0xf] %v2453
    %2710 = vst [vmem:[#allocation2 + $0x64] sm:$0xf] %v2454
    %2711 = vst [vmem:[#allocation2 + $0x68] sm:$0xf] %v2455
    %2712 = vst [vmem:[#allocation2 + $0x6c] sm:$0xf] %v2456
    %2713 = vst [vmem:[#allocation2 + $0x70] sm:$0xf] %v2457
    %2714 = vst [vmem:[#allocation2 + $0x74] sm:$0xf] %v2458
    %2715 = vst [vmem:[#allocation2 + $0x78] sm:$0xf] %v2459
    %2716 = vst [vmem:[#allocation2 + $0x7c] sm:$0xf] %v2460
    %2717 = vst [vmem:[#allocation2 + $0x80] sm:$0xf] %v2461
    %2718 = vst [vmem:[#allocation2 + $0x84] sm:$0xf] %v2462
    %2719 = vst [vmem:[#allocation2 + $0x88] sm:$0xf] %v2463
    %2720 = vst [vmem:[#allocation2 + $0x8c] sm:$0xf] %v2464
    %2721 = vst [vmem:[#allocation2 + $0x90] sm:$0xf] %v2465
    %2722 = vst [vmem:[#allocation2 + $0x94] sm:$0xf] %v2466
    %2723 = vst [vmem:[#allocation2 + $0x98] sm:$0xf] %v2467
    %2724 = vst [vmem:[#allocation2 + $0x9c] sm:$0xf] %v2468
    %2725 = vst [vmem:[#allocation2 + $0xa0] sm:$0xf] %v2469
    %2726 = vst [vmem:[#allocation2 + $0xa4] sm:$0xf] %v2470
    %2727 = vst [vmem:[#allocation2 + $0xa8] sm:$0xf] %v2471
    %2728 = vst [vmem:[#allocation2 + $0xac] sm:$0xf] %v2472
    %2729 = vst [vmem:[#allocation2 + $0xb0] sm:$0xf] %v2473
    %2730 = vst [vmem:[#allocation2 + $0xb4] sm:$0xf] %v2474
    %2731 = vst [vmem:[#allocation2 + $0xb8] sm:$0xf] %v2475
    %2732 = vst [vmem:[#allocation2 + $0xbc] sm:$0xf] %v2476
    %2733 = vst [vmem:[#allocation2 + $0xc0] sm:$0xf] %v2477
    %2734 = vst [vmem:[#allocation2 + $0xc4] sm:$0xf] %v2478
    %2735 = vst [vmem:[#allocation2 + $0xc8] sm:$0xf] %v2479
    %2736 = vst [vmem:[#allocation2 + $0xcc] sm:$0xf] %v2480
    %2737 = vst [vmem:[#allocation2 + $0xd0] sm:$0xf] %v2481
    %2738 = vst [vmem:[#allocation2 + $0xd4] sm:$0xf] %v2482
    %2739 = vst [vmem:[#allocation2 + $0xd8] sm:$0xf] %v2483
    %2740 = vst [vmem:[#allocation2 + $0xdc] sm:$0xf] %v2484
    %2741 = vst [vmem:[#allocation2 + $0xe0] sm:$0xf] %v2485
    %2742 = vst [vmem:[#allocation2 + $0xe4] sm:$0xf] %v2486
    %2743 = vst [vmem:[#allocation2 + $0xe8] sm:$0xf] %v2487
    %2744 = vst [vmem:[#allocation2 + $0xec] sm:$0xf] %v2488
    %2745 = vst [vmem:[#allocation2 + $0xf0] sm:$0xf] %v2489
    %2746 = vst [vmem:[#allocation2 + $0xf4] sm:$0xf] %v2490
    %2747 = vst [vmem:[#allocation2 + $0xf8] sm:$0xf] %v2491
    %2748 = vst [vmem:[#allocation2 + $0xfc] sm:$0xf] %v2492
    %2749 = vst [vmem:[#allocation2 + $0x100] sm:$0xf] %v2493
    %2750 = vst [vmem:[#allocation2 + $0x104] sm:$0xf] %v2494
    %2751 = vst [vmem:[#allocation2 + $0x108] sm:$0xf] %v2495
    %2752 = vst [vmem:[#allocation2 + $0x10c] sm:$0xf] %v2496
    %2753 = vst [vmem:[#allocation2 + $0x110] sm:$0xf] %v2497
    %2754 = vst [vmem:[#allocation2 + $0x114] sm:$0xf] %v2498
    %2755 = vst [vmem:[#allocation2 + $0x118] sm:$0xf] %v2499
    %2756 = vst [vmem:[#allocation2 + $0x11c] sm:$0xf] %v2500
    %2757 = vst [vmem:[#allocation2 + $0x120] sm:$0xf] %v2501
    %2758 = vst [vmem:[#allocation2 + $0x124] sm:$0xf] %v2502
    %2759 = vst [vmem:[#allocation2 + $0x128] sm:$0xf] %v2503
    %2760 = vst [vmem:[#allocation2 + $0x12c] sm:$0xf] %v2504
    %2761 = vst [vmem:[#allocation2 + $0x130] sm:$0xf] %v2505
    %2762 = vst [vmem:[#allocation2 + $0x134] sm:$0xf] %v2506
    %2763 = vst [vmem:[#allocation2 + $0x138] sm:$0xf] %v2507
    %2764 = vst [vmem:[#allocation2 + $0x13c] sm:$0xf] %v2508
    %2765 = vst [vmem:[#allocation2 + $0x140] sm:$0xf] %v2509
    %2766 = vst [vmem:[#allocation2 + $0x144] sm:$0xf] %v2510
    %2767 = vst [vmem:[#allocation2 + $0x148] sm:$0xf] %v2511
    %2768 = vst [vmem:[#allocation2 + $0x14c] sm:$0xf] %v2512
    %2769 = vst [vmem:[#allocation2 + $0x150] sm:$0xf] %v2513
    %2770 = vst [vmem:[#allocation2 + $0x154] sm:$0xf] %v2514
    %2771 = vst [vmem:[#allocation2 + $0x158] sm:$0xf] %v2515
    %2772 = vst [vmem:[#allocation2 + $0x15c] sm:$0xf] %v2516
    %2773 = vst [vmem:[#allocation2 + $0x160] sm:$0xf] %v2517
    %2774 = vst [vmem:[#allocation2 + $0x164] sm:$0xf] %v2518
    %2775 = vst [vmem:[#allocation2 + $0x168] sm:$0xf] %v2519
    %2776 = vst [vmem:[#allocation2 + $0x16c] sm:$0xf] %v2520
    %2777 = vst [vmem:[#allocation2 + $0x170] sm:$0xf] %v2521
    %2778 = vst [vmem:[#allocation2 + $0x174] sm:$0xf] %v2522
    %2779 = vst [vmem:[#allocation2 + $0x178] sm:$0xf] %v2523
    %2780 = vst [vmem:[#allocation2 + $0x17c] sm:$0xf] %v2524
    %2781 = vst [vmem:[#allocation2 + $0x180] sm:$0xf] %v2525
    %2782 = vst [vmem:[#allocation2 + $0x184] sm:$0xf] %v2526
    %2783 = vst [vmem:[#allocation2 + $0x188] sm:$0xf] %v2527
    %2784 = vst [vmem:[#allocation2 + $0x18c] sm:$0xf] %v2528
    %2785 = vst [vmem:[#allocation2 + $0x190] sm:$0xf] %v2529
    %2786 = vst [vmem:[#allocation2 + $0x194] sm:$0xf] %v2530
    %2787 = vst [vmem:[#allocation2 + $0x198] sm:$0xf] %v2531
    %2788 = vst [vmem:[#allocation2 + $0x19c] sm:$0xf] %v2532
    %2789 = vst [vmem:[#allocation2 + $0x1a0] sm:$0xf] %v2533
    %2790 = vst [vmem:[#allocation2 + $0x1a4] sm:$0xf] %v2534
    %2791 = vst [vmem:[#allocation2 + $0x1a8] sm:$0xf] %v2535
    %2792 = vst [vmem:[#allocation2 + $0x1ac] sm:$0xf] %v2536
    %2793 = vst [vmem:[#allocation2 + $0x1b0] sm:$0xf] %v2537
    %2794 = vst [vmem:[#allocation2 + $0x1b4] sm:$0xf] %v2538
    %2795 = vst [vmem:[#allocation2 + $0x1b8] sm:$0xf] %v2539
    %2796 = vst [vmem:[#allocation2 + $0x1bc] sm:$0xf] %v2540
    %2797 = vst [vmem:[#allocation2 + $0x1c0] sm:$0xf] %v2541
    %2798 = vst [vmem:[#allocation2 + $0x1c4] sm:$0xf] %v2542
    %2799 = vst [vmem:[#allocation2 + $0x1c8] sm:$0xf] %v2543
    %2800 = vst [vmem:[#allocation2 + $0x1cc] sm:$0xf] %v2544
    %2801 = vst [vmem:[#allocation2 + $0x1d0] sm:$0xf] %v2545
    %2802 = vst [vmem:[#allocation2 + $0x1d4] sm:$0xf] %v2546
    %2803 = vst [vmem:[#allocation2 + $0x1d8] sm:$0xf] %v2547
    %2804 = vst [vmem:[#allocation2 + $0x1dc] sm:$0xf] %v2548
    %2805 = vst [vmem:[#allocation2 + $0x1e0] sm:$0xf] %v2549
    %2806 = vst [vmem:[#allocation2 + $0x1e4] sm:$0xf] %v2550
    %2807 = vst [vmem:[#allocation2 + $0x1e8] sm:$0xf] %v2551
    %2808 = vst [vmem:[#allocation2 + $0x1ec] sm:$0xf] %v2552
    %2809 = vst [vmem:[#allocation2 + $0x1f0] sm:$0xf] %v2553
    %2810 = vst [vmem:[#allocation2 + $0x1f4] sm:$0xf] %v2554
    %2811 = vst [vmem:[#allocation2 + $0x1f8] sm:$0xf] %v2555
    %2812 = vst [vmem:[#allocation2 + $0x1fc] sm:$0xf] %v2556
    // Predicated region
    $region22: #{tpu_custom_call.1} parent=1 // pred_check
      _
    $region23: #{tpu_custom_call.1} parent=1 // pred_check_branch
      %2814 = sbr.rel (0) target = $region25
    $region24: #{tpu_custom_call.1} parent=1 // pred_region
      %s2816 = ssub.s32 8192, 8192
      %2817 = vsyncadd [#allocation3], %s2816
      %s2818 = sshll.u32 [#allocation2], 4
      %s2819 = int_to_ptr.vmem [resolvable:$true] %s2818
      %2824 = dma.vmem_to_hbm [thread:$0]  %s2819, 8192, %s5, [#allocation3], 64, 64, 4
    $region25: #{tpu_custom_call.1} parent=1 // pred_fallthru
      _
    // Predicated region
    $region26: #{tpu_custom_call.1} parent=1 // pred_check
      _
    $region27: #{tpu_custom_call.1} parent=1 // pred_check_branch
      %2826 = sbr.rel (0) target = $region29
    $region28: #{tpu_custom_call.1} parent=1 // pred_region
      %2827 = dma.done [#allocation3], 8192
    $region29: #{tpu_custom_call.1} parent=1 // pred_fallthru
      _
    %2828 = vsyncpa [#allocation3], 1

</llo_original>
